<compile_context>
chip_gen: v6e
topology: v6e:2x2x1
jax: 0.10.0
libtpu: 0.0.40
codegen_flags: <defaults>
</compile_context>

<pallas_src>
import functools

import jax
import jax.numpy as jnp
from jax.experimental import pallas as pl
from jax.experimental.pallas import tpu as pltpu

# ----------------------------- config ---------------------------------------
NUM_LAYER = 3
ATOM_DIM = 32          # config.atom_dim (= bond_dim)
OUT_DIM = 11
BN_EPS = 1e-5
LEAKY_SLOPE = 0.1      # forward() uses F.leaky_relu(..., negative_slope=0.1)
EDGE_CHUNK_MAX = 256   # max edges per one-hot MXU chunk


def _round_up(v, m):
    return (v + m - 1) // m * m


# --------------------------- fused Pallas kernel ------------------------------
def _fused_gnn_kernel(
    # int32 edge indices in VMEM (two orientations so both one-hots are built without transposes)
    src_ref, dst_ref,                       # [E_pad, 1], [1, E_pad]
    # VMEM data
    x0_ref, e_attr_ref, vn0_ref,            # [N_pad, D], [E_pad, D], [G_pad, D]
    b_oh_ref, p_add_ref, inv_cnt_ref,       # [N_pad, G_pad], [G_pad, N_pad], [G_pad, 1]
    # stacked GINE-layer weights (post-conv BN folded into w2/b2)
    lw1_ref, lb1_ref, lw2_ref, lb2_ref,
    # stacked virtual-node MLP weights (BN folded into each linear)
    vw1_ref, vb1_ref, vw2_ref, vb2_ref,
    # head weights
    hw1_ref, hb1_ref, hw2_ref, hb2_ref, hw3_ref, hb3_ref,
    # output
    out_ref,
    *, num_layer, edge_chunk, num_edge_chunks):
    f32 = jnp.float32
    n_pad = x0_ref.shape[0]

    x = x0_ref[...]                                             # [N_pad, D] f32, stays resident
    vn = vn0_ref[...]                                           # [G_pad, D] f32
    b_oh = b_oh_ref[...]                                        # [N_pad, G_pad] f32 (exact 0/1)
    p_add = p_add_ref[...]                                      # [G_pad, N_pad] f32 (exact 0/1)

    for layer in range(num_layer):                              # static unroll
        # ---- virtual-node broadcast: x += vn[batch] (one-hot matmul; rows of padded
        #      nodes are all-zero so they receive nothing) ----
        x = x + jnp.dot(b_oh, vn, preferred_element_type=f32)

        # ---- GINEConv message passing: agg[dst] += relu(x[src] + e_attr) ----
        # chunked one-hot MXU matmuls; padded edges carry out-of-range indices -> all-zero
        # one-hot rows/cols -> contribute nothing anywhere.
        agg = jnp.zeros_like(x)
        for c in range(num_edge_chunks):                        # static unroll
            off = c * edge_chunk
            src_c = src_ref[pl.ds(off, edge_chunk), :]          # [Ec, 1] int32
            dst_c = dst_ref[:, pl.ds(off, edge_chunk)]          # [1, Ec] int32

            iota_row = jax.lax.broadcasted_iota(jnp.int32, (edge_chunk, n_pad), 1)
            src_oh = (src_c == iota_row).astype(f32)            # [Ec, N_pad]
            x_src = jnp.dot(src_oh, x, preferred_element_type=f32)          # gather  [Ec, D]
            msg = jnp.maximum(x_src + e_attr_ref[pl.ds(off, edge_chunk), :], 0.0)

            iota_col = jax.lax.broadcasted_iota(jnp.int32, (n_pad, edge_chunk), 0)
            dst_oh_t = (dst_c == iota_col).astype(f32)          # [N_pad, Ec]
            agg = agg + jnp.dot(dst_oh_t, msg, preferred_element_type=f32)  # scatter-add

        # ---- GINE mlp (eps=0): Linear -> ReLU -> Linear (post-conv BN folded in) ----
        h = x + agg
        h = jnp.maximum(
            jnp.dot(h, lw1_ref[layer], preferred_element_type=f32) + lb1_ref[layer], 0.0)
        h = jnp.dot(h, lw2_ref[layer], preferred_element_type=f32) + lb2_ref[layer]
        # leaky_relu(0.1) after the (folded) BatchNorm
        x = jnp.where(h > 0, h, LEAKY_SLOPE * h)

        # ---- virtual-node update (all but the last layer) ----
        if layer < num_layer - 1:
            pooled = jnp.dot(p_add, x, preferred_element_type=f32) + vn
            g = jnp.maximum(
                jnp.dot(pooled, vw1_ref[layer], preferred_element_type=f32)
                + vb1_ref[layer], 0.0)
            vn = jnp.maximum(
                jnp.dot(g, vw2_ref[layer], preferred_element_type=f32)
                + vb2_ref[layer], 0.0)

    # ---- readout: global_mean_pool (= add-pool * 1/count) + 3-layer MLP head ----
    gmean = jnp.dot(p_add, x, preferred_element_type=f32) * inv_cnt_ref[...]
    h = jnp.maximum(jnp.dot(gmean, hw1_ref[...], preferred_element_type=f32) + hb1_ref[...], 0.0)
    h = jnp.maximum(jnp.dot(h, hw2_ref[...], preferred_element_type=f32) + hb2_ref[...], 0.0)
    out_ref[...] = jnp.dot(h, hw3_ref[...], preferred_element_type=f32) + hb3_ref[...]


# --------------------------- parameter init -----------------------------------
def _bn_fold_into_linear(w, b, gamma, beta, mean, var):
    """Fold eval-mode BatchNorm1d into the preceding Linear: y = x@w' + b'."""
    scale = gamma / jnp.sqrt(var + BN_EPS)                       # [D]
    w_f = w * scale[None, :]
    b_f = (b - mean[None, :]) * scale[None, :] + beta[None, :]
    return w_f, b_f


def init_params(key, dim=ATOM_DIM, num_layer=NUM_LAYER, out_dim=OUT_DIM):
    keys = iter(jax.random.split(key, 64))

    def lin(k, din, dout):
        return 0.1 * jax.random.normal(k, (din, dout), jnp.float32)

    params = {}
    params["node_emb"] = 0.1 * jax.random.normal(next(keys), (28, dim), jnp.float32)
    params["edge_emb"] = 0.1 * jax.random.normal(next(keys), (4, dim), jnp.float32)
    params["vn_emb"] = jnp.zeros((1, dim), jnp.float32)          # Embedding(1, dim) init 0

    # eval-mode BN stats for an untrained model (general folding still applied)
    gamma = jnp.ones((dim,), jnp.float32)
    beta = jnp.zeros((dim,), jnp.float32)
    mean = jnp.zeros((dim,), jnp.float32)
    var = jnp.ones((dim,), jnp.float32)

    lw1, lb1, lw2, lb2 = [], [], [], []
    for _ in range(num_layer):
        w1 = lin(next(keys), dim, dim); b1 = jnp.zeros((1, dim), jnp.float32)
        w2 = lin(next(keys), dim, dim); b2 = jnp.zeros((1, dim), jnp.float32)
        # post-conv BatchNorm1d (eval) folded into the GINE mlp's second Linear
        w2f, b2f = _bn_fold_into_linear(w2, b2, gamma, beta, mean, var)
        lw1.append(w1); lb1.append(b1); lw2.append(w2f); lb2.append(b2f)

    vw1, vb1, vw2, vb2 = [], [], [], []
    for _ in range(num_layer - 1):
        w1 = lin(next(keys), dim, dim); b1 = jnp.zeros((1, dim), jnp.float32)
        w2 = lin(next(keys), dim, dim); b2 = jnp.zeros((1, dim), jnp.float32)
        w1f, b1f = _bn_fold_into_linear(w1, b1, gamma, beta, mean, var)
        w2f, b2f = _bn_fold_into_linear(w2, b2, gamma, beta, mean, var)
        vw1.append(w1f); vb1.append(b1f); vw2.append(w2f); vb2.append(b2f)

    hw1 = lin(next(keys), dim, dim // 2); hb1 = jnp.zeros((1, dim // 2), jnp.float32)
    hw2 = lin(next(keys), dim // 2, dim // 4); hb2 = jnp.zeros((1, dim // 4), jnp.float32)
    hw3 = lin(next(keys), dim // 4, out_dim); hb3 = jnp.zeros((1, out_dim), jnp.float32)

    params["stacked"] = dict(
        lw1=jnp.stack(lw1), lb1=jnp.stack(lb1), lw2=jnp.stack(lw2), lb2=jnp.stack(lb2),
        vw1=jnp.stack(vw1), vb1=jnp.stack(vb1), vw2=jnp.stack(vw2), vb2=jnp.stack(vb2),
        hw1=hw1, hb1=hb1, hw2=hw2, hb2=hb2, hw3=hw3, hb3=hb3)
    return params


# ------------------------------ forward ---------------------------------------
@functools.partial(jax.jit, static_argnames=("num_graphs",))
def gnn_virtualnode_forward(params, atom_ids, edge_index, bond_ids, batch, num_graphs):
    dim = params["node_emb"].shape[1]
    n = int(atom_ids.shape[0])
    e = int(bond_ids.shape[0])
    g = int(num_graphs)

    # ---- padding (dummy slots carry out-of-range indices -> zero one-hot rows/cols) ----
    n_pad = _round_up(max(n, 1), 8)
    g_pad = _round_up(max(g, 1), 8)
    e8 = _round_up(max(e, 1), 8)
    edge_chunk = min(EDGE_CHUNK_MAX, e8)
    e_pad = _round_up(e8, edge_chunk)
    num_chunks = e_pad // edge_chunk

    atom_ids_p = jnp.zeros((n_pad,), jnp.int32).at[:n].set(atom_ids.astype(jnp.int32))
    batch_p = jnp.full((n_pad,), g_pad, jnp.int32).at[:n].set(batch.astype(jnp.int32))
    src_p = jnp.full((e_pad,), n_pad, jnp.int32).at[:e].set(edge_index[0].astype(jnp.int32))
    dst_p = jnp.full((e_pad,), n_pad, jnp.int32).at[:e].set(edge_index[1].astype(jnp.int32))
    bond_ids_p = jnp.zeros((e_pad,), jnp.int32).at[:e].set(bond_ids.astype(jnp.int32))

    # ---- encoders (embedding lookups — glue) ----
    x0 = jnp.take(params["node_emb"], atom_ids_p, axis=0)        # [N_pad, D]
    e_attr = jnp.take(params["edge_emb"], bond_ids_p, axis=0)    # [E_pad, D]

    # ---- small structural operands (exact 0/1 in f32) ----
    gids = jnp.arange(g_pad, dtype=jnp.int32)
    b_onehot = (batch_p[:, None] == gids[None, :]).astype(jnp.float32)   # [N_pad, G_pad]
    p_add = (gids[:, None] == batch_p[None, :]).astype(jnp.float32)      # [G_pad, N_pad]
    counts = jnp.maximum(p_add.sum(axis=1, keepdims=True), 1.0)
    inv_cnt = 1.0 / counts                                               # [G_pad, 1]

    # virtual-node embedding: Embedding(1, dim), one copy per graph (init 0)
    vn0 = jnp.broadcast_to(params["vn_emb"], (g_pad, dim)).astype(jnp.float32)

    src_col = src_p[:, None]                                     # [E_pad, 1]
    dst_row = dst_p[None, :]                                     # [1, E_pad]

    st = params["stacked"]
    args = (src_col, dst_row, x0, e_attr, vn0, b_onehot, p_add, inv_cnt,
            st["lw1"], st["lb1"], st["lw2"], st["lb2"],
            st["vw1"], st["vb1"], st["vw2"], st["vb2"],
            st["hw1"], st["hb1"], st["hw2"], st["hb2"], st["hw3"], st["hb3"])

    vmem_spec = pl.BlockSpec(memory_space=pltpu.MemorySpace.VMEM)

    kernel = functools.partial(
        _fused_gnn_kernel, num_layer=NUM_LAYER,
        edge_chunk=edge_chunk, num_edge_chunks=num_chunks)

    out = pl.pallas_call(
        kernel,
        out_shape=jax.ShapeDtypeStruct((g_pad, OUT_DIM), jnp.float32),
        in_specs=[vmem_spec] * len(args),
        out_specs=vmem_spec,
        compiler_params=pltpu.CompilerParams(vmem_limit_bytes=64 * 1024 * 1024),
    )(*args)

    return out[:g]                                               # [G, 11]


# -------------------------- pure-JAX reference ---------------------------------
def _reference_forward(params, atom_ids, edge_index, bond_ids, batch, num_graphs):
    st = params["stacked"]
    dim = params["node_emb"].shape[1]
    x = params["node_emb"][atom_ids]
    e_attr = params["edge_emb"][bond_ids]
    src, dst = edge_index[0], edge_index[1]
    vn = jnp.broadcast_to(params["vn_emb"], (num_graphs, dim))
    for layer in range(NUM_LAYER):
        x = x + vn[batch]
        msg = jax.nn.relu(x[src] + e_attr)
        agg = jnp.zeros_like(x).at[dst].add(msg)
        h = x + agg
        h = jax.nn.relu(h @ st["lw1"][layer] + st["lb1"][layer])
        h = h @ st["lw2"][layer] + st["lb2"][layer]
        x = jnp.where(h > 0, h, LEAKY_SLOPE * h)
        if layer < NUM_LAYER - 1:
            pooled = jnp.zeros((num_graphs, dim), jnp.float32).at[batch].add(x) + vn
            gmid = jax.nn.relu(pooled @ st["vw1"][layer] + st["vb1"][layer])
            vn = jax.nn.relu(gmid @ st["vw2"][layer] + st["vb2"][layer])
    counts = jnp.zeros((num_graphs,), jnp.float32).at[batch].add(1.0)
    gmean = jnp.zeros((num_graphs, dim), jnp.float32).at[batch].add(x) / counts[:, None]
    h = jax.nn.relu(gmean @ st["hw1"] + st["hb1"])
    h = jax.nn.relu(h @ st["hw2"] + st["hb2"])
    return h @ st["hw3"] + st["hb3"]


# ------------------------------ main -------------------------------------------
if __name__ == "__main__":
    key = jax.random.PRNGKey(0)
    k_param, k_atom, k_bond = jax.random.split(key, 3)

    # small synthetic zinc-style batch: 2 graphs, 12 nodes, 24 directed edges
    num_graphs = 2
    sizes = [7, 5]
    batch = jnp.array([0] * sizes[0] + [1] * sizes[1], dtype=jnp.int32)       # [12]
    atom_ids = jax.random.randint(k_atom, (12,), 0, 28, dtype=jnp.int32)      # [12]

    # ring edges within each graph, both directions
    src0 = jnp.arange(7); dst0 = (src0 + 1) % 7
    src1 = 7 + jnp.arange(5); dst1 = 7 + (jnp.arange(5) + 1) % 5
    src = jnp.concatenate([src0, dst0, src1, dst1]).astype(jnp.int32)
    dst = jnp.concatenate([dst0, src0, dst1, src1]).astype(jnp.int32)
    edge_index = jnp.stack([src, dst], axis=0)                                # [2, 24]
    bond_ids = jax.random.randint(k_bond, (24,), 0, 4, dtype=jnp.int32)       # [24]

    params = init_params(k_param)

    out = gnn_virtualnode_forward(params, atom_ids, edge_index, bond_ids,
                                  batch, num_graphs=num_graphs)
    out = jax.block_until_ready(out)

    assert out.shape == (num_graphs, OUT_DIM) and out.dtype == jnp.float32
    assert bool(jnp.all(jnp.isfinite(out)))

    ref = _reference_forward(params, atom_ids, edge_index, bond_ids, batch, num_graphs)
    assert bool(jnp.allclose(out, ref, atol=1e-4, rtol=1e-3)), (
        f"kernel/reference mismatch: max abs err = {jnp.max(jnp.abs(out - ref))}")

    print("KERNEL_OK")
</pallas_src>

<mosaic_0001>
module attributes {stable_mosaic.version = 11 : i64} {
  func.func @_fused_gnn_kernel(%arg0: memref<24x1xi32, #tpu.memory_space<vmem>>, %arg1: memref<1x24xi32, #tpu.memory_space<vmem>>, %arg2: memref<16x32xf32, #tpu.memory_space<vmem>>, %arg3: memref<24x32xf32, #tpu.memory_space<vmem>>, %arg4: memref<8x32xf32, #tpu.memory_space<vmem>>, %arg5: memref<16x8xf32, #tpu.memory_space<vmem>>, %arg6: memref<8x16xf32, #tpu.memory_space<vmem>>, %arg7: memref<8x1xf32, #tpu.memory_space<vmem>>, %arg8: memref<3x32x32xf32, #tpu.memory_space<vmem>>, %arg9: memref<3x1x32xf32, #tpu.memory_space<vmem>>, %arg10: memref<3x32x32xf32, #tpu.memory_space<vmem>>, %arg11: memref<3x1x32xf32, #tpu.memory_space<vmem>>, %arg12: memref<2x32x32xf32, #tpu.memory_space<vmem>>, %arg13: memref<2x1x32xf32, #tpu.memory_space<vmem>>, %arg14: memref<2x32x32xf32, #tpu.memory_space<vmem>>, %arg15: memref<2x1x32xf32, #tpu.memory_space<vmem>>, %arg16: memref<32x16xf32, #tpu.memory_space<vmem>>, %arg17: memref<1x16xf32, #tpu.memory_space<vmem>>, %arg18: memref<16x8xf32, #tpu.memory_space<vmem>>, %arg19: memref<1x8xf32, #tpu.memory_space<vmem>>, %arg20: memref<8x11xf32, #tpu.memory_space<vmem>>, %arg21: memref<1x11xf32, #tpu.memory_space<vmem>>, %arg22: memref<8x11xf32, #tpu.memory_space<vmem>>) attributes {dimension_semantics = [], scalar_prefetch = 0 : i64, scratch_operands = 0 : i64, tpu.core_type = #tpu.core_type<tc>} {
    %c0 = arith.constant 0 : index
    %c0_0 = arith.constant 0 : index
    %0 = vector.load %arg2[%c0, %c0_0] : memref<16x32xf32, #tpu.memory_space<vmem>>, vector<16x32xf32>
    %c0_1 = arith.constant 0 : index
    %c0_2 = arith.constant 0 : index
    %1 = vector.load %arg4[%c0_1, %c0_2] : memref<8x32xf32, #tpu.memory_space<vmem>>, vector<8x32xf32>
    %c0_3 = arith.constant 0 : index
    %c0_4 = arith.constant 0 : index
    %2 = vector.load %arg5[%c0_3, %c0_4] : memref<16x8xf32, #tpu.memory_space<vmem>>, vector<16x8xf32>
    %c0_5 = arith.constant 0 : index
    %c0_6 = arith.constant 0 : index
    %3 = vector.load %arg6[%c0_5, %c0_6] : memref<8x16xf32, #tpu.memory_space<vmem>>, vector<8x16xf32>
    %cst = arith.constant dense<0.000000e+00> : vector<16x32xf32>
    %4 = tpu.matmul %2, %1, %cst {dimension_numbers = #tpu.dot_dimension_numbers<[1], [0], [0], [1], [0, 0, 1, 1], [], []>} : vector<16x8xf32>, vector<8x32xf32>, vector<16x32xf32> -> vector<16x32xf32>
    %5 = arith.addf %0, %4 : vector<16x32xf32>
    %cst_7 = arith.constant 0.000000e+00 : f32
    %6 = vector.broadcast %cst_7 : f32 to vector<16x32xf32>
    %c0_8 = arith.constant 0 : index
    %c0_9 = arith.constant 0 : index
    %7 = vector.load %arg0[%c0_8, %c0_9] : memref<24x1xi32, #tpu.memory_space<vmem>>, vector<24x1xi32>
    %c0_10 = arith.constant 0 : index
    %c0_11 = arith.constant 0 : index
    %8 = vector.load %arg1[%c0_10, %c0_11] : memref<1x24xi32, #tpu.memory_space<vmem>>, vector<1x24xi32>
    %9 = tpu.iota {dimensions = array<i32: 1>} : vector<24x16xi32>
    %10 = vector.broadcast %7 : vector<24x1xi32> to vector<24x16xi32>
    %11 = arith.cmpi eq, %10, %9 : vector<24x16xi32>
    %12 = arith.extui %11 : vector<24x16xi1> to vector<24x16xi32>
    %13 = arith.sitofp %12 : vector<24x16xi32> to vector<24x16xf32>
    %cst_12 = arith.constant dense<0.000000e+00> : vector<24x32xf32>
    %14 = tpu.matmul %13, %5, %cst_12 {dimension_numbers = #tpu.dot_dimension_numbers<[1], [0], [0], [1], [0, 0, 1, 1], [], []>} : vector<24x16xf32>, vector<16x32xf32>, vector<24x32xf32> -> vector<24x32xf32>
    %c0_13 = arith.constant 0 : index
    %c0_14 = arith.constant 0 : index
    %15 = vector.load %arg3[%c0_13, %c0_14] : memref<24x32xf32, #tpu.memory_space<vmem>>, vector<24x32xf32>
    %16 = arith.addf %14, %15 : vector<24x32xf32>
    %cst_15 = arith.constant 0.000000e+00 : f32
    %17 = vector.broadcast %cst_15 : f32 to vector<24x32xf32>
    %18 = arith.maximumf %16, %17 : vector<24x32xf32>
    %19 = tpu.iota {dimensions = array<i32: 0>} : vector<16x24xi32>
    %20 = vector.broadcast %8 : vector<1x24xi32> to vector<16x24xi32>
    %21 = arith.cmpi eq, %20, %19 : vector<16x24xi32>
    %22 = arith.extui %21 : vector<16x24xi1> to vector<16x24xi32>
    %23 = arith.sitofp %22 : vector<16x24xi32> to vector<16x24xf32>
    %cst_16 = arith.constant dense<0.000000e+00> : vector<16x32xf32>
    %24 = tpu.matmul %23, %18, %cst_16 {dimension_numbers = #tpu.dot_dimension_numbers<[1], [0], [0], [1], [0, 0, 1, 1], [], []>} : vector<16x24xf32>, vector<24x32xf32>, vector<16x32xf32> -> vector<16x32xf32>
    %25 = arith.addf %6, %24 : vector<16x32xf32>
    %26 = arith.addf %5, %25 : vector<16x32xf32>
    %c0_17 = arith.constant 0 : index
    %c0_18 = arith.constant 0 : index
    %c0_19 = arith.constant 0 : index
    %27 = vector.load %arg8[%c0_17, %c0_18, %c0_19] : memref<3x32x32xf32, #tpu.memory_space<vmem>>, vector<1x32x32xf32>
    %28 = vector.shape_cast %27 : vector<1x32x32xf32> to vector<32x32xf32>
    %cst_20 = arith.constant dense<0.000000e+00> : vector<16x32xf32>
    %29 = tpu.matmul %26, %28, %cst_20 {dimension_numbers = #tpu.dot_dimension_numbers<[1], [0], [0], [1], [0, 0, 1, 1], [], []>} : vector<16x32xf32>, vector<32x32xf32>, vector<16x32xf32> -> vector<16x32xf32>
    %c0_21 = arith.constant 0 : index
    %c0_22 = arith.constant 0 : index
    %c0_23 = arith.constant 0 : index
    %30 = vector.load %arg9[%c0_21, %c0_22, %c0_23] : memref<3x1x32xf32, #tpu.memory_space<vmem>>, vector<1x1x32xf32>
    %31 = vector.shape_cast %30 : vector<1x1x32xf32> to vector<1x32xf32>
    %32 = vector.broadcast %31 : vector<1x32xf32> to vector<16x32xf32>
    %33 = arith.addf %29, %32 : vector<16x32xf32>
    %cst_24 = arith.constant 0.000000e+00 : f32
    %34 = vector.broadcast %cst_24 : f32 to vector<16x32xf32>
    %35 = arith.maximumf %33, %34 : vector<16x32xf32>
    %c0_25 = arith.constant 0 : index
    %c0_26 = arith.constant 0 : index
    %c0_27 = arith.constant 0 : index
    %36 = vector.load %arg10[%c0_25, %c0_26, %c0_27] : memref<3x32x32xf32, #tpu.memory_space<vmem>>, vector<1x32x32xf32>
    %37 = vector.shape_cast %36 : vector<1x32x32xf32> to vector<32x32xf32>
    %cst_28 = arith.constant dense<0.000000e+00> : vector<16x32xf32>
    %38 = tpu.matmul %35, %37, %cst_28 {dimension_numbers = #tpu.dot_dimension_numbers<[1], [0], [0], [1], [0, 0, 1, 1], [], []>} : vector<16x32xf32>, vector<32x32xf32>, vector<16x32xf32> -> vector<16x32xf32>
    %c0_29 = arith.constant 0 : index
    %c0_30 = arith.constant 0 : index
    %c0_31 = arith.constant 0 : index
    %39 = vector.load %arg11[%c0_29, %c0_30, %c0_31] : memref<3x1x32xf32, #tpu.memory_space<vmem>>, vector<1x1x32xf32>
    %40 = vector.shape_cast %39 : vector<1x1x32xf32> to vector<1x32xf32>
    %41 = vector.broadcast %40 : vector<1x32xf32> to vector<16x32xf32>
    %42 = arith.addf %38, %41 : vector<16x32xf32>
    %cst_32 = arith.constant 0.000000e+00 : f32
    %43 = vector.broadcast %cst_32 : f32 to vector<16x32xf32>
    %44 = arith.cmpf ogt, %42, %43 : vector<16x32xf32>
    %cst_33 = arith.constant 1.000000e-01 : f32
    %45 = vector.broadcast %cst_33 : f32 to vector<16x32xf32>
    %46 = arith.mulf %45, %42 : vector<16x32xf32>
    %47 = arith.select %44, %42, %46 : vector<16x32xi1>, vector<16x32xf32>
    %cst_34 = arith.constant dense<0.000000e+00> : vector<8x32xf32>
    %48 = tpu.matmul %3, %47, %cst_34 {dimension_numbers = #tpu.dot_dimension_numbers<[1], [0], [0], [1], [0, 0, 1, 1], [], []>} : vector<8x16xf32>, vector<16x32xf32>, vector<8x32xf32> -> vector<8x32xf32>
    %49 = arith.addf %48, %1 : vector<8x32xf32>
    %c0_35 = arith.constant 0 : index
    %c0_36 = arith.constant 0 : index
    %c0_37 = arith.constant 0 : index
    %50 = vector.load %arg12[%c0_35, %c0_36, %c0_37] : memref<2x32x32xf32, #tpu.memory_space<vmem>>, vector<1x32x32xf32>
    %51 = vector.shape_cast %50 : vector<1x32x32xf32> to vector<32x32xf32>
    %cst_38 = arith.constant dense<0.000000e+00> : vector<8x32xf32>
    %52 = tpu.matmul %49, %51, %cst_38 {dimension_numbers = #tpu.dot_dimension_numbers<[1], [0], [0], [1], [0, 0, 1, 1], [], []>} : vector<8x32xf32>, vector<32x32xf32>, vector<8x32xf32> -> vector<8x32xf32>
    %c0_39 = arith.constant 0 : index
    %c0_40 = arith.constant 0 : index
    %c0_41 = arith.constant 0 : index
    %53 = vector.load %arg13[%c0_39, %c0_40, %c0_41] : memref<2x1x32xf32, #tpu.memory_space<vmem>>, vector<1x1x32xf32>
    %54 = vector.shape_cast %53 : vector<1x1x32xf32> to vector<1x32xf32>
    %55 = vector.broadcast %54 : vector<1x32xf32> to vector<8x32xf32>
    %56 = arith.addf %52, %55 : vector<8x32xf32>
    %cst_42 = arith.constant 0.000000e+00 : f32
    %57 = vector.broadcast %cst_42 : f32 to vector<8x32xf32>
    %58 = arith.maximumf %56, %57 : vector<8x32xf32>
    %c0_43 = arith.constant 0 : index
    %c0_44 = arith.constant 0 : index
    %c0_45 = arith.constant 0 : index
    %59 = vector.load %arg14[%c0_43, %c0_44, %c0_45] : memref<2x32x32xf32, #tpu.memory_space<vmem>>, vector<1x32x32xf32>
    %60 = vector.shape_cast %59 : vector<1x32x32xf32> to vector<32x32xf32>
    %cst_46 = arith.constant dense<0.000000e+00> : vector<8x32xf32>
    %61 = tpu.matmul %58, %60, %cst_46 {dimension_numbers = #tpu.dot_dimension_numbers<[1], [0], [0], [1], [0, 0, 1, 1], [], []>} : vector<8x32xf32>, vector<32x32xf32>, vector<8x32xf32> -> vector<8x32xf32>
    %c0_47 = arith.constant 0 : index
    %c0_48 = arith.constant 0 : index
    %c0_49 = arith.constant 0 : index
    %62 = vector.load %arg15[%c0_47, %c0_48, %c0_49] : memref<2x1x32xf32, #tpu.memory_space<vmem>>, vector<1x1x32xf32>
    %63 = vector.shape_cast %62 : vector<1x1x32xf32> to vector<1x32xf32>
    %64 = vector.broadcast %63 : vector<1x32xf32> to vector<8x32xf32>
    %65 = arith.addf %61, %64 : vector<8x32xf32>
    %cst_50 = arith.constant 0.000000e+00 : f32
    %66 = vector.broadcast %cst_50 : f32 to vector<8x32xf32>
    %67 = arith.maximumf %65, %66 : vector<8x32xf32>
    %cst_51 = arith.constant dense<0.000000e+00> : vector<16x32xf32>
    %68 = tpu.matmul %2, %67, %cst_51 {dimension_numbers = #tpu.dot_dimension_numbers<[1], [0], [0], [1], [0, 0, 1, 1], [], []>} : vector<16x8xf32>, vector<8x32xf32>, vector<16x32xf32> -> vector<16x32xf32>
    %69 = arith.addf %47, %68 : vector<16x32xf32>
    %cst_52 = arith.constant 0.000000e+00 : f32
    %70 = vector.broadcast %cst_52 : f32 to vector<16x32xf32>
    %c0_53 = arith.constant 0 : index
    %c0_54 = arith.constant 0 : index
    %71 = vector.load %arg0[%c0_53, %c0_54] : memref<24x1xi32, #tpu.memory_space<vmem>>, vector<24x1xi32>
    %c0_55 = arith.constant 0 : index
    %c0_56 = arith.constant 0 : index
    %72 = vector.load %arg1[%c0_55, %c0_56] : memref<1x24xi32, #tpu.memory_space<vmem>>, vector<1x24xi32>
    %73 = tpu.iota {dimensions = array<i32: 1>} : vector<24x16xi32>
    %74 = vector.broadcast %71 : vector<24x1xi32> to vector<24x16xi32>
    %75 = arith.cmpi eq, %74, %73 : vector<24x16xi32>
    %76 = arith.extui %75 : vector<24x16xi1> to vector<24x16xi32>
    %77 = arith.sitofp %76 : vector<24x16xi32> to vector<24x16xf32>
    %cst_57 = arith.constant dense<0.000000e+00> : vector<24x32xf32>
    %78 = tpu.matmul %77, %69, %cst_57 {dimension_numbers = #tpu.dot_dimension_numbers<[1], [0], [0], [1], [0, 0, 1, 1], [], []>} : vector<24x16xf32>, vector<16x32xf32>, vector<24x32xf32> -> vector<24x32xf32>
    %c0_58 = arith.constant 0 : index
    %c0_59 = arith.constant 0 : index
    %79 = vector.load %arg3[%c0_58, %c0_59] : memref<24x32xf32, #tpu.memory_space<vmem>>, vector<24x32xf32>
    %80 = arith.addf %78, %79 : vector<24x32xf32>
    %cst_60 = arith.constant 0.000000e+00 : f32
    %81 = vector.broadcast %cst_60 : f32 to vector<24x32xf32>
    %82 = arith.maximumf %80, %81 : vector<24x32xf32>
    %83 = tpu.iota {dimensions = array<i32: 0>} : vector<16x24xi32>
    %84 = vector.broadcast %72 : vector<1x24xi32> to vector<16x24xi32>
    %85 = arith.cmpi eq, %84, %83 : vector<16x24xi32>
    %86 = arith.extui %85 : vector<16x24xi1> to vector<16x24xi32>
    %87 = arith.sitofp %86 : vector<16x24xi32> to vector<16x24xf32>
    %cst_61 = arith.constant dense<0.000000e+00> : vector<16x32xf32>
    %88 = tpu.matmul %87, %82, %cst_61 {dimension_numbers = #tpu.dot_dimension_numbers<[1], [0], [0], [1], [0, 0, 1, 1], [], []>} : vector<16x24xf32>, vector<24x32xf32>, vector<16x32xf32> -> vector<16x32xf32>
    %89 = arith.addf %70, %88 : vector<16x32xf32>
    %90 = arith.addf %69, %89 : vector<16x32xf32>
    %c1 = arith.constant 1 : index
    %c0_62 = arith.constant 0 : index
    %c0_63 = arith.constant 0 : index
    %91 = vector.load %arg8[%c1, %c0_62, %c0_63] : memref<3x32x32xf32, #tpu.memory_space<vmem>>, vector<1x32x32xf32>
    %92 = vector.shape_cast %91 : vector<1x32x32xf32> to vector<32x32xf32>
    %cst_64 = arith.constant dense<0.000000e+00> : vector<16x32xf32>
    %93 = tpu.matmul %90, %92, %cst_64 {dimension_numbers = #tpu.dot_dimension_numbers<[1], [0], [0], [1], [0, 0, 1, 1], [], []>} : vector<16x32xf32>, vector<32x32xf32>, vector<16x32xf32> -> vector<16x32xf32>
    %c1_65 = arith.constant 1 : index
    %c0_66 = arith.constant 0 : index
    %c0_67 = arith.constant 0 : index
    %94 = vector.load %arg9[%c1_65, %c0_66, %c0_67] : memref<3x1x32xf32, #tpu.memory_space<vmem>>, vector<1x1x32xf32>
    %95 = vector.shape_cast %94 : vector<1x1x32xf32> to vector<1x32xf32>
    %96 = vector.broadcast %95 : vector<1x32xf32> to vector<16x32xf32>
    %97 = arith.addf %93, %96 : vector<16x32xf32>
    %cst_68 = arith.constant 0.000000e+00 : f32
    %98 = vector.broadcast %cst_68 : f32 to vector<16x32xf32>
    %99 = arith.maximumf %97, %98 : vector<16x32xf32>
    %c1_69 = arith.constant 1 : index
    %c0_70 = arith.constant 0 : index
    %c0_71 = arith.constant 0 : index
    %100 = vector.load %arg10[%c1_69, %c0_70, %c0_71] : memref<3x32x32xf32, #tpu.memory_space<vmem>>, vector<1x32x32xf32>
    %101 = vector.shape_cast %100 : vector<1x32x32xf32> to vector<32x32xf32>
    %cst_72 = arith.constant dense<0.000000e+00> : vector<16x32xf32>
    %102 = tpu.matmul %99, %101, %cst_72 {dimension_numbers = #tpu.dot_dimension_numbers<[1], [0], [0], [1], [0, 0, 1, 1], [], []>} : vector<16x32xf32>, vector<32x32xf32>, vector<16x32xf32> -> vector<16x32xf32>
    %c1_73 = arith.constant 1 : index
    %c0_74 = arith.constant 0 : index
    %c0_75 = arith.constant 0 : index
    %103 = vector.load %arg11[%c1_73, %c0_74, %c0_75] : memref<3x1x32xf32, #tpu.memory_space<vmem>>, vector<1x1x32xf32>
    %104 = vector.shape_cast %103 : vector<1x1x32xf32> to vector<1x32xf32>
    %105 = vector.broadcast %104 : vector<1x32xf32> to vector<16x32xf32>
    %106 = arith.addf %102, %105 : vector<16x32xf32>
    %cst_76 = arith.constant 0.000000e+00 : f32
    %107 = vector.broadcast %cst_76 : f32 to vector<16x32xf32>
    %108 = arith.cmpf ogt, %106, %107 : vector<16x32xf32>
    %cst_77 = arith.constant 1.000000e-01 : f32
    %109 = vector.broadcast %cst_77 : f32 to vector<16x32xf32>
    %110 = arith.mulf %109, %106 : vector<16x32xf32>
    %111 = arith.select %108, %106, %110 : vector<16x32xi1>, vector<16x32xf32>
    %cst_78 = arith.constant dense<0.000000e+00> : vector<8x32xf32>
    %112 = tpu.matmul %3, %111, %cst_78 {dimension_numbers = #tpu.dot_dimension_numbers<[1], [0], [0], [1], [0, 0, 1, 1], [], []>} : vector<8x16xf32>, vector<16x32xf32>, vector<8x32xf32> -> vector<8x32xf32>
    %113 = arith.addf %112, %67 : vector<8x32xf32>
    %c1_79 = arith.constant 1 : index
    %c0_80 = arith.constant 0 : index
    %c0_81 = arith.constant 0 : index
    %114 = vector.load %arg12[%c1_79, %c0_80, %c0_81] : memref<2x32x32xf32, #tpu.memory_space<vmem>>, vector<1x32x32xf32>
    %115 = vector.shape_cast %114 : vector<1x32x32xf32> to vector<32x32xf32>
    %cst_82 = arith.constant dense<0.000000e+00> : vector<8x32xf32>
    %116 = tpu.matmul %113, %115, %cst_82 {dimension_numbers = #tpu.dot_dimension_numbers<[1], [0], [0], [1], [0, 0, 1, 1], [], []>} : vector<8x32xf32>, vector<32x32xf32>, vector<8x32xf32> -> vector<8x32xf32>
    %c1_83 = arith.constant 1 : index
    %c0_84 = arith.constant 0 : index
    %c0_85 = arith.constant 0 : index
    %117 = vector.load %arg13[%c1_83, %c0_84, %c0_85] : memref<2x1x32xf32, #tpu.memory_space<vmem>>, vector<1x1x32xf32>
    %118 = vector.shape_cast %117 : vector<1x1x32xf32> to vector<1x32xf32>
    %119 = vector.broadcast %118 : vector<1x32xf32> to vector<8x32xf32>
    %120 = arith.addf %116, %119 : vector<8x32xf32>
    %cst_86 = arith.constant 0.000000e+00 : f32
    %121 = vector.broadcast %cst_86 : f32 to vector<8x32xf32>
    %122 = arith.maximumf %120, %121 : vector<8x32xf32>
    %c1_87 = arith.constant 1 : index
    %c0_88 = arith.constant 0 : index
    %c0_89 = arith.constant 0 : index
    %123 = vector.load %arg14[%c1_87, %c0_88, %c0_89] : memref<2x32x32xf32, #tpu.memory_space<vmem>>, vector<1x32x32xf32>
    %124 = vector.shape_cast %123 : vector<1x32x32xf32> to vector<32x32xf32>
    %cst_90 = arith.constant dense<0.000000e+00> : vector<8x32xf32>
    %125 = tpu.matmul %122, %124, %cst_90 {dimension_numbers = #tpu.dot_dimension_numbers<[1], [0], [0], [1], [0, 0, 1, 1], [], []>} : vector<8x32xf32>, vector<32x32xf32>, vector<8x32xf32> -> vector<8x32xf32>
    %c1_91 = arith.constant 1 : index
    %c0_92 = arith.constant 0 : index
    %c0_93 = arith.constant 0 : index
    %126 = vector.load %arg15[%c1_91, %c0_92, %c0_93] : memref<2x1x32xf32, #tpu.memory_space<vmem>>, vector<1x1x32xf32>
    %127 = vector.shape_cast %126 : vector<1x1x32xf32> to vector<1x32xf32>
    %128 = vector.broadcast %127 : vector<1x32xf32> to vector<8x32xf32>
    %129 = arith.addf %125, %128 : vector<8x32xf32>
    %cst_94 = arith.constant 0.000000e+00 : f32
    %130 = vector.broadcast %cst_94 : f32 to vector<8x32xf32>
    %131 = arith.maximumf %129, %130 : vector<8x32xf32>
    %cst_95 = arith.constant dense<0.000000e+00> : vector<16x32xf32>
    %132 = tpu.matmul %2, %131, %cst_95 {dimension_numbers = #tpu.dot_dimension_numbers<[1], [0], [0], [1], [0, 0, 1, 1], [], []>} : vector<16x8xf32>, vector<8x32xf32>, vector<16x32xf32> -> vector<16x32xf32>
    %133 = arith.addf %111, %132 : vector<16x32xf32>
    %cst_96 = arith.constant 0.000000e+00 : f32
    %134 = vector.broadcast %cst_96 : f32 to vector<16x32xf32>
    %c0_97 = arith.constant 0 : index
    %c0_98 = arith.constant 0 : index
    %135 = vector.load %arg0[%c0_97, %c0_98] : memref<24x1xi32, #tpu.memory_space<vmem>>, vector<24x1xi32>
    %c0_99 = arith.constant 0 : index
    %c0_100 = arith.constant 0 : index
    %136 = vector.load %arg1[%c0_99, %c0_100] : memref<1x24xi32, #tpu.memory_space<vmem>>, vector<1x24xi32>
    %137 = tpu.iota {dimensions = array<i32: 1>} : vector<24x16xi32>
    %138 = vector.broadcast %135 : vector<24x1xi32> to vector<24x16xi32>
    %139 = arith.cmpi eq, %138, %137 : vector<24x16xi32>
    %140 = arith.extui %139 : vector<24x16xi1> to vector<24x16xi32>
    %141 = arith.sitofp %140 : vector<24x16xi32> to vector<24x16xf32>
    %cst_101 = arith.constant dense<0.000000e+00> : vector<24x32xf32>
    %142 = tpu.matmul %141, %133, %cst_101 {dimension_numbers = #tpu.dot_dimension_numbers<[1], [0], [0], [1], [0, 0, 1, 1], [], []>} : vector<24x16xf32>, vector<16x32xf32>, vector<24x32xf32> -> vector<24x32xf32>
    %c0_102 = arith.constant 0 : index
    %c0_103 = arith.constant 0 : index
    %143 = vector.load %arg3[%c0_102, %c0_103] : memref<24x32xf32, #tpu.memory_space<vmem>>, vector<24x32xf32>
    %144 = arith.addf %142, %143 : vector<24x32xf32>
    %cst_104 = arith.constant 0.000000e+00 : f32
    %145 = vector.broadcast %cst_104 : f32 to vector<24x32xf32>
    %146 = arith.maximumf %144, %145 : vector<24x32xf32>
    %147 = tpu.iota {dimensions = array<i32: 0>} : vector<16x24xi32>
    %148 = vector.broadcast %136 : vector<1x24xi32> to vector<16x24xi32>
    %149 = arith.cmpi eq, %148, %147 : vector<16x24xi32>
    %150 = arith.extui %149 : vector<16x24xi1> to vector<16x24xi32>
    %151 = arith.sitofp %150 : vector<16x24xi32> to vector<16x24xf32>
    %cst_105 = arith.constant dense<0.000000e+00> : vector<16x32xf32>
    %152 = tpu.matmul %151, %146, %cst_105 {dimension_numbers = #tpu.dot_dimension_numbers<[1], [0], [0], [1], [0, 0, 1, 1], [], []>} : vector<16x24xf32>, vector<24x32xf32>, vector<16x32xf32> -> vector<16x32xf32>
    %153 = arith.addf %134, %152 : vector<16x32xf32>
    %154 = arith.addf %133, %153 : vector<16x32xf32>
    %c2 = arith.constant 2 : index
    %c0_106 = arith.constant 0 : index
    %c0_107 = arith.constant 0 : index
    %155 = vector.load %arg8[%c2, %c0_106, %c0_107] : memref<3x32x32xf32, #tpu.memory_space<vmem>>, vector<1x32x32xf32>
    %156 = vector.shape_cast %155 : vector<1x32x32xf32> to vector<32x32xf32>
    %cst_108 = arith.constant dense<0.000000e+00> : vector<16x32xf32>
    %157 = tpu.matmul %154, %156, %cst_108 {dimension_numbers = #tpu.dot_dimension_numbers<[1], [0], [0], [1], [0, 0, 1, 1], [], []>} : vector<16x32xf32>, vector<32x32xf32>, vector<16x32xf32> -> vector<16x32xf32>
    %c2_109 = arith.constant 2 : index
    %c0_110 = arith.constant 0 : index
    %c0_111 = arith.constant 0 : index
    %158 = vector.load %arg9[%c2_109, %c0_110, %c0_111] : memref<3x1x32xf32, #tpu.memory_space<vmem>>, vector<1x1x32xf32>
    %159 = vector.shape_cast %158 : vector<1x1x32xf32> to vector<1x32xf32>
    %160 = vector.broadcast %159 : vector<1x32xf32> to vector<16x32xf32>
    %161 = arith.addf %157, %160 : vector<16x32xf32>
    %cst_112 = arith.constant 0.000000e+00 : f32
    %162 = vector.broadcast %cst_112 : f32 to vector<16x32xf32>
    %163 = arith.maximumf %161, %162 : vector<16x32xf32>
    %c2_113 = arith.constant 2 : index
    %c0_114 = arith.constant 0 : index
    %c0_115 = arith.constant 0 : index
    %164 = vector.load %arg10[%c2_113, %c0_114, %c0_115] : memref<3x32x32xf32, #tpu.memory_space<vmem>>, vector<1x32x32xf32>
    %165 = vector.shape_cast %164 : vector<1x32x32xf32> to vector<32x32xf32>
    %cst_116 = arith.constant dense<0.000000e+00> : vector<16x32xf32>
    %166 = tpu.matmul %163, %165, %cst_116 {dimension_numbers = #tpu.dot_dimension_numbers<[1], [0], [0], [1], [0, 0, 1, 1], [], []>} : vector<16x32xf32>, vector<32x32xf32>, vector<16x32xf32> -> vector<16x32xf32>
    %c2_117 = arith.constant 2 : index
    %c0_118 = arith.constant 0 : index
    %c0_119 = arith.constant 0 : index
    %167 = vector.load %arg11[%c2_117, %c0_118, %c0_119] : memref<3x1x32xf32, #tpu.memory_space<vmem>>, vector<1x1x32xf32>
    %168 = vector.shape_cast %167 : vector<1x1x32xf32> to vector<1x32xf32>
    %169 = vector.broadcast %168 : vector<1x32xf32> to vector<16x32xf32>
    %170 = arith.addf %166, %169 : vector<16x32xf32>
    %cst_120 = arith.constant 0.000000e+00 : f32
    %171 = vector.broadcast %cst_120 : f32 to vector<16x32xf32>
    %172 = arith.cmpf ogt, %170, %171 : vector<16x32xf32>
    %cst_121 = arith.constant 1.000000e-01 : f32
    %173 = vector.broadcast %cst_121 : f32 to vector<16x32xf32>
    %174 = arith.mulf %173, %170 : vector<16x32xf32>
    %175 = arith.select %172, %170, %174 : vector<16x32xi1>, vector<16x32xf32>
    %cst_122 = arith.constant dense<0.000000e+00> : vector<8x32xf32>
    %176 = tpu.matmul %3, %175, %cst_122 {dimension_numbers = #tpu.dot_dimension_numbers<[1], [0], [0], [1], [0, 0, 1, 1], [], []>} : vector<8x16xf32>, vector<16x32xf32>, vector<8x32xf32> -> vector<8x32xf32>
    %c0_123 = arith.constant 0 : index
    %c0_124 = arith.constant 0 : index
    %177 = vector.load %arg7[%c0_123, %c0_124] : memref<8x1xf32, #tpu.memory_space<vmem>>, vector<8x1xf32>
    %178 = vector.broadcast %177 : vector<8x1xf32> to vector<8x32xf32>
    %179 = arith.mulf %176, %178 : vector<8x32xf32>
    %c0_125 = arith.constant 0 : index
    %c0_126 = arith.constant 0 : index
    %180 = vector.load %arg16[%c0_125, %c0_126] : memref<32x16xf32, #tpu.memory_space<vmem>>, vector<32x16xf32>
    %cst_127 = arith.constant dense<0.000000e+00> : vector<8x16xf32>
    %181 = tpu.matmul %179, %180, %cst_127 {dimension_numbers = #tpu.dot_dimension_numbers<[1], [0], [0], [1], [0, 0, 1, 1], [], []>} : vector<8x32xf32>, vector<32x16xf32>, vector<8x16xf32> -> vector<8x16xf32>
    %c0_128 = arith.constant 0 : index
    %c0_129 = arith.constant 0 : index
    %182 = vector.load %arg17[%c0_128, %c0_129] : memref<1x16xf32, #tpu.memory_space<vmem>>, vector<1x16xf32>
    %183 = vector.broadcast %182 : vector<1x16xf32> to vector<8x16xf32>
    %184 = arith.addf %181, %183 : vector<8x16xf32>
    %cst_130 = arith.constant 0.000000e+00 : f32
    %185 = vector.broadcast %cst_130 : f32 to vector<8x16xf32>
    %186 = arith.maximumf %184, %185 : vector<8x16xf32>
    %c0_131 = arith.constant 0 : index
    %c0_132 = arith.constant 0 : index
    %187 = vector.load %arg18[%c0_131, %c0_132] : memref<16x8xf32, #tpu.memory_space<vmem>>, vector<16x8xf32>
    %cst_133 = arith.constant dense<0.000000e+00> : vector<8x8xf32>
    %188 = tpu.matmul %186, %187, %cst_133 {dimension_numbers = #tpu.dot_dimension_numbers<[1], [0], [0], [1], [0, 0, 1, 1], [], []>} : vector<8x16xf32>, vector<16x8xf32>, vector<8x8xf32> -> vector<8x8xf32>
    %c0_134 = arith.constant 0 : index
    %c0_135 = arith.constant 0 : index
    %189 = vector.load %arg19[%c0_134, %c0_135] : memref<1x8xf32, #tpu.memory_space<vmem>>, vector<1x8xf32>
    %190 = vector.broadcast %189 : vector<1x8xf32> to vector<8x8xf32>
    %191 = arith.addf %188, %190 : vector<8x8xf32>
    %cst_136 = arith.constant 0.000000e+00 : f32
    %192 = vector.broadcast %cst_136 : f32 to vector<8x8xf32>
    %193 = arith.maximumf %191, %192 : vector<8x8xf32>
    %c0_137 = arith.constant 0 : index
    %c0_138 = arith.constant 0 : index
    %194 = vector.load %arg20[%c0_137, %c0_138] : memref<8x11xf32, #tpu.memory_space<vmem>>, vector<8x11xf32>
    %cst_139 = arith.constant dense<0.000000e+00> : vector<8x11xf32>
    %195 = tpu.matmul %193, %194, %cst_139 {dimension_numbers = #tpu.dot_dimension_numbers<[1], [0], [0], [1], [0, 0, 1, 1], [], []>} : vector<8x8xf32>, vector<8x11xf32>, vector<8x11xf32> -> vector<8x11xf32>
    %c0_140 = arith.constant 0 : index
    %c0_141 = arith.constant 0 : index
    %196 = vector.load %arg21[%c0_140, %c0_141] : memref<1x11xf32, #tpu.memory_space<vmem>>, vector<1x11xf32>
    %197 = vector.broadcast %196 : vector<1x11xf32> to vector<8x11xf32>
    %198 = arith.addf %195, %197 : vector<8x11xf32>
    %c0_142 = arith.constant 0 : index
    %c0_143 = arith.constant 0 : index
    %199 = vector.load %arg22[%c0_142, %c0_143] : memref<8x11xf32, #tpu.memory_space<vmem>>, vector<8x11xf32>
    tpu.vector_store %arg22[%c0_142, %c0_143], %198 {strides = array<i32>} : memref<8x11xf32, #tpu.memory_space<vmem>>, vector<8x11xf32>,
    return
  }
}

</mosaic_0001>

<llo_original>
// kernel: gnn_virtualnode_forward.1
$region0: #{gnn_virtualnode_forward.1}
  #allocation0 [shape = 'u32[]', space=smem, size = 0x4, offset = 0x4, fixed_abs, tag = 'smem constant byte address 0x4 - core index']
  #allocation1 [shape = 'u32[144,128]{1,0:T(1,128)}', space=vmem, size = 0x12000, scoped, tag = 'internal scratch']
  %s0 = inlined_call_operand.vmem [shape: s32[24,1], index: 0, kind: input, shape index: {}]
  %s1 = inlined_call_operand.vmem [shape: s32[1,24], index: 1, kind: input, shape index: {}]
  %s2 = inlined_call_operand.vmem [shape: f32[16,32], index: 2, kind: input, shape index: {}]
  %s3 = inlined_call_operand.vmem [shape: f32[24,32], index: 3, kind: input, shape index: {}]
  %s4 = inlined_call_operand.vmem [shape: f32[8,32], index: 4, kind: input, shape index: {}]
  %s5 = inlined_call_operand.vmem [shape: f32[16,8], index: 5, kind: input, shape index: {}]
  %s6 = inlined_call_operand.vmem [shape: f32[8,16], index: 6, kind: input, shape index: {}]
  %s7 = inlined_call_operand.vmem [shape: f32[8,1], index: 7, kind: input, shape index: {}]
  %s8 = inlined_call_operand.vmem [shape: f32[3,32,32], index: 8, kind: input, shape index: {}]
  %s9 = inlined_call_operand.vmem [shape: f32[3,1,32], index: 9, kind: input, shape index: {}]
  %s10 = inlined_call_operand.vmem [shape: f32[3,32,32], index: 10, kind: input, shape index: {}]
  %s11 = inlined_call_operand.vmem [shape: f32[3,1,32], index: 11, kind: input, shape index: {}]
  %s12 = inlined_call_operand.vmem [shape: f32[2,32,32], index: 12, kind: input, shape index: {}]
  %s13 = inlined_call_operand.vmem [shape: f32[2,1,32], index: 13, kind: input, shape index: {}]
  %s14 = inlined_call_operand.vmem [shape: f32[2,32,32], index: 14, kind: input, shape index: {}]
  %s15 = inlined_call_operand.vmem [shape: f32[2,1,32], index: 15, kind: input, shape index: {}]
  %s16 = inlined_call_operand.vmem [shape: f32[32,16], index: 16, kind: input, shape index: {}]
  %s17 = inlined_call_operand.vmem [shape: f32[1,16], index: 17, kind: input, shape index: {}]
  %s18 = inlined_call_operand.vmem [shape: f32[16,8], index: 18, kind: input, shape index: {}]
  %s19 = inlined_call_operand.vmem [shape: f32[1,8], index: 19, kind: input, shape index: {}]
  %s20 = inlined_call_operand.vmem [shape: f32[8,11], index: 20, kind: input, shape index: {}]
  %s21 = inlined_call_operand.vmem [shape: f32[1,11], index: 21, kind: input, shape index: {}]
  %s22 = inlined_call_operand.vmem [shape: f32[8,11], index: 22, kind: output, shape index: {}]
  %s23 = sld [smem:[#allocation0]]
  $region98: #{gnn_virtualnode_forward.1} parent=0
    _
  %s25 = ssub.s32 1, %s23
  %s26 = scalar_select 0, %s25, %s23
  // Predicated region
  $region2: #{gnn_virtualnode_forward.1} parent=0 // pred_check
    _
  $region3: #{gnn_virtualnode_forward.1} parent=0 // pred_check_branch
    %28 = sbr.rel (0) target = $region5
  $region4: #{gnn_virtualnode_forward.1} parent=0 // pred_region
    _
  $region5: #{gnn_virtualnode_forward.1} parent=0 // pred_fallthru
    _
  // Predicated region
  $region6: #{gnn_virtualnode_forward.1} parent=0 // pred_check
    _
  $region7: #{gnn_virtualnode_forward.1} parent=0 // pred_check_branch
    %30 = sbr.rel (0) target = $region9
  $region8: #{gnn_virtualnode_forward.1} parent=0 // pred_region
    _
  $region9: #{gnn_virtualnode_forward.1} parent=0 // pred_fallthru
    _
  // Predicated region
  $region10: #{gnn_virtualnode_forward.1} parent=0 // pred_check
    _
  $region11: #{gnn_virtualnode_forward.1} parent=0 // pred_check_branch
    %32 = sbr.rel (0) target = $region13
  $region12: #{gnn_virtualnode_forward.1} parent=0 // pred_region
    _
  $region13: #{gnn_virtualnode_forward.1} parent=0 // pred_fallthru
    _
  // Predicated region
  $region14: #{gnn_virtualnode_forward.1} parent=0 // pred_check
    _
  $region15: #{gnn_virtualnode_forward.1} parent=0 // pred_check_branch
    %34 = sbr.rel (0) target = $region17
  $region16: #{gnn_virtualnode_forward.1} parent=0 // pred_region
    _
  $region17: #{gnn_virtualnode_forward.1} parent=0 // pred_fallthru
    _
  // Predicated region
  $region18: #{gnn_virtualnode_forward.1} parent=0 // pred_check
    _
  $region19: #{gnn_virtualnode_forward.1} parent=0 // pred_check_branch
    %36 = sbr.rel (0) target = $region21
  $region20: #{gnn_virtualnode_forward.1} parent=0 // pred_region
    _
  $region21: #{gnn_virtualnode_forward.1} parent=0 // pred_fallthru
    _
  // Predicated region
  $region22: #{gnn_virtualnode_forward.1} parent=0 // pred_check
    _
  $region23: #{gnn_virtualnode_forward.1} parent=0 // pred_check_branch
    %38 = sbr.rel (0) target = $region25
  $region24: #{gnn_virtualnode_forward.1} parent=0 // pred_region
    _
  $region25: #{gnn_virtualnode_forward.1} parent=0 // pred_fallthru
    _
  // Predicated region
  $region26: #{gnn_virtualnode_forward.1} parent=0 // pred_check
    _
  $region27: #{gnn_virtualnode_forward.1} parent=0 // pred_check_branch
    %40 = sbr.rel (0) target = $region29
  $region28: #{gnn_virtualnode_forward.1} parent=0 // pred_region
    _
  $region29: #{gnn_virtualnode_forward.1} parent=0 // pred_fallthru
    _
  // Predicated region
  $region30: #{gnn_virtualnode_forward.1} parent=0 // pred_check
    _
  $region31: #{gnn_virtualnode_forward.1} parent=0 // pred_check_branch
    %42 = sbr.rel (0) target = $region33
  $region32: #{gnn_virtualnode_forward.1} parent=0 // pred_region
    _
  $region33: #{gnn_virtualnode_forward.1} parent=0 // pred_fallthru
    _
  // Predicated region
  $region34: #{gnn_virtualnode_forward.1} parent=0 // pred_check
    _
  $region35: #{gnn_virtualnode_forward.1} parent=0 // pred_check_branch
    %44 = sbr.rel (0) target = $region37
  $region36: #{gnn_virtualnode_forward.1} parent=0 // pred_region
    _
  $region37: #{gnn_virtualnode_forward.1} parent=0 // pred_fallthru
    _
  // Predicated region
  $region38: #{gnn_virtualnode_forward.1} parent=0 // pred_check
    _
  $region39: #{gnn_virtualnode_forward.1} parent=0 // pred_check_branch
    %46 = sbr.rel (0) target = $region41
  $region40: #{gnn_virtualnode_forward.1} parent=0 // pred_region
    _
  $region41: #{gnn_virtualnode_forward.1} parent=0 // pred_fallthru
    _
  // Predicated region
  $region42: #{gnn_virtualnode_forward.1} parent=0 // pred_check
    _
  $region43: #{gnn_virtualnode_forward.1} parent=0 // pred_check_branch
    %48 = sbr.rel (0) target = $region45
  $region44: #{gnn_virtualnode_forward.1} parent=0 // pred_region
    _
  $region45: #{gnn_virtualnode_forward.1} parent=0 // pred_fallthru
    _
  // Predicated region
  $region46: #{gnn_virtualnode_forward.1} parent=0 // pred_check
    _
  $region47: #{gnn_virtualnode_forward.1} parent=0 // pred_check_branch
    %50 = sbr.rel (0) target = $region49
  $region48: #{gnn_virtualnode_forward.1} parent=0 // pred_region
    _
  $region49: #{gnn_virtualnode_forward.1} parent=0 // pred_fallthru
    _
  // Predicated region
  $region50: #{gnn_virtualnode_forward.1} parent=0 // pred_check
    _
  $region51: #{gnn_virtualnode_forward.1} parent=0 // pred_check_branch
    %52 = sbr.rel (0) target = $region53
  $region52: #{gnn_virtualnode_forward.1} parent=0 // pred_region
    _
  $region53: #{gnn_virtualnode_forward.1} parent=0 // pred_fallthru
    _
  // Predicated region
  $region54: #{gnn_virtualnode_forward.1} parent=0 // pred_check
    _
  $region55: #{gnn_virtualnode_forward.1} parent=0 // pred_check_branch
    %54 = sbr.rel (0) target = $region57
  $region56: #{gnn_virtualnode_forward.1} parent=0 // pred_region
    _
  $region57: #{gnn_virtualnode_forward.1} parent=0 // pred_fallthru
    _
  // Predicated region
  $region58: #{gnn_virtualnode_forward.1} parent=0 // pred_check
    _
  $region59: #{gnn_virtualnode_forward.1} parent=0 // pred_check_branch
    %56 = sbr.rel (0) target = $region61
  $region60: #{gnn_virtualnode_forward.1} parent=0 // pred_region
    _
  $region61: #{gnn_virtualnode_forward.1} parent=0 // pred_fallthru
    _
  // Predicated region
  $region62: #{gnn_virtualnode_forward.1} parent=0 // pred_check
    _
  $region63: #{gnn_virtualnode_forward.1} parent=0 // pred_check_branch
    %58 = sbr.rel (0) target = $region65
  $region64: #{gnn_virtualnode_forward.1} parent=0 // pred_region
    _
  $region65: #{gnn_virtualnode_forward.1} parent=0 // pred_fallthru
    _
  // Predicated region
  $region66: #{gnn_virtualnode_forward.1} parent=0 // pred_check
    _
  $region67: #{gnn_virtualnode_forward.1} parent=0 // pred_check_branch
    %60 = sbr.rel (0) target = $region69
  $region68: #{gnn_virtualnode_forward.1} parent=0 // pred_region
    _
  $region69: #{gnn_virtualnode_forward.1} parent=0 // pred_fallthru
    _
  // Predicated region
  $region70: #{gnn_virtualnode_forward.1} parent=0 // pred_check
    _
  $region71: #{gnn_virtualnode_forward.1} parent=0 // pred_check_branch
    %62 = sbr.rel (0) target = $region73
  $region72: #{gnn_virtualnode_forward.1} parent=0 // pred_region
    _
  $region73: #{gnn_virtualnode_forward.1} parent=0 // pred_fallthru
    _
  // Predicated region
  $region74: #{gnn_virtualnode_forward.1} parent=0 // pred_check
    _
  $region75: #{gnn_virtualnode_forward.1} parent=0 // pred_check_branch
    %64 = sbr.rel (0) target = $region77
  $region76: #{gnn_virtualnode_forward.1} parent=0 // pred_region
    _
  $region77: #{gnn_virtualnode_forward.1} parent=0 // pred_fallthru
    _
  // Predicated region
  $region78: #{gnn_virtualnode_forward.1} parent=0 // pred_check
    _
  $region79: #{gnn_virtualnode_forward.1} parent=0 // pred_check_branch
    %66 = sbr.rel (0) target = $region81
  $region80: #{gnn_virtualnode_forward.1} parent=0 // pred_region
    _
  $region81: #{gnn_virtualnode_forward.1} parent=0 // pred_fallthru
    _
  // Predicated region
  $region82: #{gnn_virtualnode_forward.1} parent=0 // pred_check
    _
  $region83: #{gnn_virtualnode_forward.1} parent=0 // pred_check_branch
    %68 = sbr.rel (0) target = $region85
  $region84: #{gnn_virtualnode_forward.1} parent=0 // pred_region
    _
  $region85: #{gnn_virtualnode_forward.1} parent=0 // pred_fallthru
    _
  // Predicated region
  $region86: #{gnn_virtualnode_forward.1} parent=0 // pred_check
    _
  $region87: #{gnn_virtualnode_forward.1} parent=0 // pred_check_branch
    %70 = sbr.rel (0) target = $region89
  $region88: #{gnn_virtualnode_forward.1} parent=0 // pred_region
    _
  $region89: #{gnn_virtualnode_forward.1} parent=0 // pred_fallthru
    _
  %v71 = vld [vmem:[%s2] sm:$0xff]
  %v72 = vld [vmem:[%s2 + $0x8] sm:$0xff]
  %v73 = vld [vmem:[%s4] sm:$0xff]
  %v74 = vld [vmem:[%s5] sm:$0xff]
  %v75 = vld [vmem:[%s5 + $0x8] sm:$0xff]
  %v76 = vld [vmem:[%s6] sm:$0xff]
  %vm77 = vcmask 64512
  %v79 = vsel %vm77, %v74, 0
  %v82 = vsel %vm77, %v75, 0
  %84 = vmatprep.subr.mxu0 0.0
  %85 = vmatpush1.msra.mxu0 0.0
  %86 = vmatprep.subr.mxu0 0.0
  %87 = vmatpush1.msra.mxu0 0.0
  %88 = vmatprep.subr.mxu0 0.0
  %89 = vmatpush1.msra.mxu0 0.0
  %90 = vmatprep.subr.mxu0 0.0
  %91 = vmatpush1.msra.mxu0 0.0
  %92 = vmatprep.subr.mxu0 0.0
  %93 = vmatpush1.msra.mxu0 0.0
  %94 = vmatprep.subr.mxu0 0.0
  %95 = vmatpush1.msra.mxu0 0.0
  %96 = vmatprep.subr.mxu0 0.0
  %97 = vmatpush1.msra.mxu0 0.0
  %98 = vmatprep.subr.mxu0 0.0
  %99 = vmatpush1.msra.mxu0 0.0
  %100 = vmatprep.subr.mxu0 0.0
  %101 = vmatpush1.msra.mxu0 0.0
  %102 = vmatprep.subr.mxu0 0.0
  %103 = vmatpush1.msra.mxu0 0.0
  %104 = vmatprep.subr.mxu0 0.0
  %105 = vmatpush1.msra.mxu0 0.0
  %106 = vmatprep.subr.mxu0 0.0
  %107 = vmatpush1.msra.mxu0 0.0
  %108 = vmatprep.subr.mxu0 0.0
  %109 = vmatpush1.msra.mxu0 0.0
  %110 = vmatprep.subr.mxu0 0.0
  %111 = vmatpush1.msra.mxu0 0.0
  %112 = vmatprep.subr.mxu0 0.0
  %113 = vmatpush1.msra.mxu0 0.0
  %114 = vmatprep.subr.mxu0 0.0
  %115 = vmatpush1.msra.mxu0 %v73
  %116 = vmatprep.subr.mxu0 0.0
  %117 = vmatpush2.msra.mxu0 0.0
  %118 = vmatprep.subr.mxu0 0.0
  %119 = vmatpush2.msra.mxu0 0.0
  %120 = vmatprep.subr.mxu0 0.0
  %121 = vmatpush2.msra.mxu0 0.0
  %122 = vmatprep.subr.mxu0 0.0
  %123 = vmatpush2.msra.mxu0 0.0
  %124 = vmatprep.subr.mxu0 0.0
  %125 = vmatpush2.msra.mxu0 0.0
  %126 = vmatprep.subr.mxu0 0.0
  %127 = vmatpush2.msra.mxu0 0.0
  %128 = vmatprep.subr.mxu0 0.0
  %129 = vmatpush2.msra.mxu0 0.0
  %130 = vmatprep.subr.mxu0 0.0
  %131 = vmatpush2.msra.mxu0 0.0
  %132 = vmatprep.subr.mxu0 0.0
  %133 = vmatpush2.msra.mxu0 0.0
  %134 = vmatprep.subr.mxu0 0.0
  %135 = vmatpush2.msra.mxu0 0.0
  %136 = vmatprep.subr.mxu0 0.0
  %137 = vmatpush2.msra.mxu0 0.0
  %138 = vmatprep.subr.mxu0 0.0
  %139 = vmatpush2.msra.mxu0 0.0
  %140 = vmatprep.subr.mxu0 0.0
  %141 = vmatpush2.msra.mxu0 0.0
  %142 = vmatprep.subr.mxu0 0.0
  %143 = vmatpush2.msra.mxu0 0.0
  %144 = vmatprep.subr.mxu0 0.0
  %145 = vmatpush2.msra.mxu0 0.0
  %146 = vmatprep.subr.mxu0 0.0
  %147 = vmatpush2.msra.mxu0 0.0
  %148 = vmatprep.mubr.f32.mxu0 0.0
  %149 = vmatmul.mubr.f32.gmra.mxu0 %v79
  %v150 = vpop.f32.mrf.mxu0
  %v151 = vadd.f32 0.0, %v150
  %v152 = vpop.f32.mrf.mxu0
  %153 = vmatprep.mubr.f32.mxu0 0.0
  %154 = vmatmul.mubr.f32.gmra.mxu0 %v82
  %v155 = vpop.f32.mrf.mxu0
  %v156 = vadd.f32 0.0, %v155
  %v157 = vpop.f32.mrf.mxu0
  %158 = vdwg.mxu0
  %v159 = vadd.f32 %v71, %v151
  %v160 = vadd.f32 %v72, %v156
  %v161 = vld [vmem:[%s0] sm:$0xff]
  %v162 = vld [vmem:[%s0 + $0x8] sm:$0xff]
  %v163 = vld [vmem:[%s0 + $0x10] sm:$0xff]
  %v164 = vld [vmem:[%s1] sm:$0x1]
  %v165 = vlaneseq
  %v166 = vand.u32 %v165, 127
  %167 = vset.pattern.permute.xlu0 0
  %168 = vperm.xlu0 %167, %v161
  %v169 = vpop.permute.xlu0 %168
  %170 = vset.pattern.permute.xlu0 0
  %171 = vperm.xlu0 %170, %v162
  %v172 = vpop.permute.xlu0 %171
  %173 = vset.pattern.permute.xlu0 0
  %174 = vperm.xlu0 %173, %v163
  %v175 = vpop.permute.xlu0 %174
  %vm176 = vcmp.eq.s32.totalorder %v169, %v166
  %vm177 = vcmp.eq.s32.totalorder %v172, %v166
  %vm178 = vcmp.eq.s32.totalorder %v175, %v166
  %v179 = vsel %vm176, 1, 0
  %v180 = vsel %vm177, 1, 0
  %v181 = vsel %vm178, 1, 0
  %v182 = vcvt.s32.f32 %v179
  %v183 = vcvt.s32.f32 %v180
  %v184 = vcvt.s32.f32 %v181
  %v185 = vld [vmem:[%s3] sm:$0xff]
  %v186 = vld [vmem:[%s3 + $0x8] sm:$0xff]
  %v187 = vld [vmem:[%s3 + $0x10] sm:$0xff]
  %vm188 = vcmask 130048
  %v190 = vsel %vm188, %v182, 0
  %v193 = vsel %vm188, %v183, 0
  %v196 = vsel %vm188, %v184, 0
  %198 = vmatprep.subr.mxu0 0.0
  %199 = vmatpush1.msra.mxu0 0.0
  %200 = vmatprep.subr.mxu0 0.0
  %201 = vmatpush1.msra.mxu0 0.0
  %202 = vmatprep.subr.mxu0 0.0
  %203 = vmatpush1.msra.mxu0 0.0
  %204 = vmatprep.subr.mxu0 0.0
  %205 = vmatpush1.msra.mxu0 0.0
  %206 = vmatprep.subr.mxu0 0.0
  %207 = vmatpush1.msra.mxu0 0.0
  %208 = vmatprep.subr.mxu0 0.0
  %209 = vmatpush1.msra.mxu0 0.0
  %210 = vmatprep.subr.mxu0 0.0
  %211 = vmatpush1.msra.mxu0 0.0
  %212 = vmatprep.subr.mxu0 0.0
  %213 = vmatpush1.msra.mxu0 0.0
  %214 = vmatprep.subr.mxu0 0.0
  %215 = vmatpush1.msra.mxu0 0.0
  %216 = vmatprep.subr.mxu0 0.0
  %217 = vmatpush1.msra.mxu0 0.0
  %218 = vmatprep.subr.mxu0 0.0
  %219 = vmatpush1.msra.mxu0 0.0
  %220 = vmatprep.subr.mxu0 0.0
  %221 = vmatpush1.msra.mxu0 0.0
  %222 = vmatprep.subr.mxu0 0.0
  %223 = vmatpush1.msra.mxu0 0.0
  %224 = vmatprep.subr.mxu0 0.0
  %225 = vmatpush1.msra.mxu0 0.0
  %226 = vmatprep.subr.mxu0 0.0
  %227 = vmatpush1.msra.mxu0 %v160
  %228 = vmatprep.subr.mxu0 0.0
  %229 = vmatpush1.msra.mxu0 %v159
  %230 = vmatprep.subr.mxu0 0.0
  %231 = vmatpush2.msra.mxu0 0.0
  %232 = vmatprep.subr.mxu0 0.0
  %233 = vmatpush2.msra.mxu0 0.0
  %234 = vmatprep.subr.mxu0 0.0
  %235 = vmatpush2.msra.mxu0 0.0
  %236 = vmatprep.subr.mxu0 0.0
  %237 = vmatpush2.msra.mxu0 0.0
  %238 = vmatprep.subr.mxu0 0.0
  %239 = vmatpush2.msra.mxu0 0.0
  %240 = vmatprep.subr.mxu0 0.0
  %241 = vmatpush2.msra.mxu0 0.0
  %242 = vmatprep.subr.mxu0 0.0
  %243 = vmatpush2.msra.mxu0 0.0
  %244 = vmatprep.subr.mxu0 0.0
  %245 = vmatpush2.msra.mxu0 0.0
  %246 = vmatprep.subr.mxu0 0.0
  %247 = vmatpush2.msra.mxu0 0.0
  %248 = vmatprep.subr.mxu0 0.0
  %249 = vmatpush2.msra.mxu0 0.0
  %250 = vmatprep.subr.mxu0 0.0
  %251 = vmatpush2.msra.mxu0 0.0
  %252 = vmatprep.subr.mxu0 0.0
  %253 = vmatpush2.msra.mxu0 0.0
  %254 = vmatprep.subr.mxu0 0.0
  %255 = vmatpush2.msra.mxu0 0.0
  %256 = vmatprep.subr.mxu0 0.0
  %257 = vmatpush2.msra.mxu0 0.0
  %258 = vmatprep.subr.mxu0 0.0
  %259 = vmatpush2.msra.mxu0 0.0
  %260 = vmatprep.subr.mxu0 0.0
  %261 = vmatpush2.msra.mxu0 0.0
  %262 = vmatprep.mubr.f32.mxu0 0.0
  %263 = vmatmul.mubr.f32.gmra.mxu0 %v190
  %v264 = vpop.f32.mrf.mxu0
  %v265 = vadd.f32 %v185, %v264
  %v266 = vpop.f32.mrf.mxu0
  %267 = vmatprep.mubr.f32.mxu0 0.0
  %268 = vmatmul.mubr.f32.gmra.mxu0 %v193
  %v269 = vpop.f32.mrf.mxu0
  %v270 = vadd.f32 %v186, %v269
  %v271 = vpop.f32.mrf.mxu0
  %272 = vmatprep.mubr.f32.mxu0 0.0
  %273 = vmatmul.mubr.f32.gmra.mxu0 %v196
  %v274 = vpop.f32.mrf.mxu0
  %v275 = vadd.f32 %v187, %v274
  %v276 = vpop.f32.mrf.mxu0
  %277 = vdwg.mxu0
  %v278 = vmax.f32 %v265, 0.0
  %v279 = vmax.f32 %v270, 0.0
  %v280 = vmax.f32 %v275, 0.0
  %v281 = vlaneseq
  %v282 = vshrl.u32 %v281, 7
  %v283 = vadd.s32 %v282, 8
  %v284 = vlaneseq
  %v285 = vshrl.u32 %v284, 7
  %v286 = vsub.s32 0, %v285
  %v287 = vrot.slane %v164, %v286
  %vm288 = vcmp.eq.s32.totalorder %v287, %v282
  %vm289 = vcmp.eq.s32.totalorder %v287, %v283
  %v290 = vsel %vm288, 1, 0
  %v291 = vsel %vm289, 1, 0
  %v292 = vcvt.s32.f32 %v290
  %v293 = vcvt.s32.f32 %v291
  %vm294 = vcmask 195584
  %v296 = vsel %vm294, %v292, 0
  %v299 = vsel %vm294, %v293, 0
  %301 = vmatprep.subr.mxu0 0.0
  %302 = vmatpush1.msra.mxu0 0.0
  %303 = vmatprep.subr.mxu0 0.0
  %304 = vmatpush1.msra.mxu0 0.0
  %305 = vmatprep.subr.mxu0 0.0
  %306 = vmatpush1.msra.mxu0 0.0
  %307 = vmatprep.subr.mxu0 0.0
  %308 = vmatpush1.msra.mxu0 0.0
  %309 = vmatprep.subr.mxu0 0.0
  %310 = vmatpush1.msra.mxu0 0.0
  %311 = vmatprep.subr.mxu0 0.0
  %312 = vmatpush1.msra.mxu0 0.0
  %313 = vmatprep.subr.mxu0 0.0
  %314 = vmatpush1.msra.mxu0 0.0
  %315 = vmatprep.subr.mxu0 0.0
  %316 = vmatpush1.msra.mxu0 0.0
  %317 = vmatprep.subr.mxu0 0.0
  %318 = vmatpush1.msra.mxu0 0.0
  %319 = vmatprep.subr.mxu0 0.0
  %320 = vmatpush1.msra.mxu0 0.0
  %321 = vmatprep.subr.mxu0 0.0
  %322 = vmatpush1.msra.mxu0 0.0
  %323 = vmatprep.subr.mxu0 0.0
  %324 = vmatpush1.msra.mxu0 0.0
  %325 = vmatprep.subr.mxu0 0.0
  %326 = vmatpush1.msra.mxu0 0.0
  %327 = vmatprep.subr.mxu0 0.0
  %328 = vmatpush1.msra.mxu0 %v280
  %329 = vmatprep.subr.mxu0 0.0
  %330 = vmatpush1.msra.mxu0 %v279
  %331 = vmatprep.subr.mxu0 0.0
  %332 = vmatpush1.msra.mxu0 %v278
  %333 = vmatprep.subr.mxu0 0.0
  %334 = vmatpush2.msra.mxu0 0.0
  %335 = vmatprep.subr.mxu0 0.0
  %336 = vmatpush2.msra.mxu0 0.0
  %337 = vmatprep.subr.mxu0 0.0
  %338 = vmatpush2.msra.mxu0 0.0
  %339 = vmatprep.subr.mxu0 0.0
  %340 = vmatpush2.msra.mxu0 0.0
  %341 = vmatprep.subr.mxu0 0.0
  %342 = vmatpush2.msra.mxu0 0.0
  %343 = vmatprep.subr.mxu0 0.0
  %344 = vmatpush2.msra.mxu0 0.0
  %345 = vmatprep.subr.mxu0 0.0
  %346 = vmatpush2.msra.mxu0 0.0
  %347 = vmatprep.subr.mxu0 0.0
  %348 = vmatpush2.msra.mxu0 0.0
  %349 = vmatprep.subr.mxu0 0.0
  %350 = vmatpush2.msra.mxu0 0.0
  %351 = vmatprep.subr.mxu0 0.0
  %352 = vmatpush2.msra.mxu0 0.0
  %353 = vmatprep.subr.mxu0 0.0
  %354 = vmatpush2.msra.mxu0 0.0
  %355 = vmatprep.subr.mxu0 0.0
  %356 = vmatpush2.msra.mxu0 0.0
  %357 = vmatprep.subr.mxu0 0.0
  %358 = vmatpush2.msra.mxu0 0.0
  %359 = vmatprep.subr.mxu0 0.0
  %360 = vmatpush2.msra.mxu0 0.0
  %361 = vmatprep.subr.mxu0 0.0
  %362 = vmatpush2.msra.mxu0 0.0
  %363 = vmatprep.subr.mxu0 0.0
  %364 = vmatpush2.msra.mxu0 0.0
  %365 = vmatprep.mubr.f32.mxu0 0.0
  %366 = vmatmul.mubr.f32.gmra.mxu0 %v296
  %v367 = vpop.f32.mrf.mxu0
  %v368 = vadd.f32 0.0, %v367
  %v369 = vpop.f32.mrf.mxu0
  %370 = vmatprep.mubr.f32.mxu0 0.0
  %371 = vmatmul.mubr.f32.gmra.mxu0 %v299
  %v372 = vpop.f32.mrf.mxu0
  %v373 = vadd.f32 0.0, %v372
  %v374 = vpop.f32.mrf.mxu0
  %375 = vdwg.mxu0
  %v376 = vadd.f32 %v159, %v368
  %v377 = vadd.f32 %v160, %v373
  %v378 = vld [vmem:[%s8] sm:$0xff]
  %v379 = vld [vmem:[%s8 + $0x8] sm:$0xff]
  %v380 = vld [vmem:[%s8 + $0x10] sm:$0xff]
  %v381 = vld [vmem:[%s8 + $0x18] sm:$0xff]
  %v382 = vld [vmem:[%s9] sm:$0x1]
  %v384 = vlaneseq
  %v385 = vshrl.u32 %v384, 7
  %v386 = vsub.s32 0, %v385
  %v387 = vrot.slane %v382, %v386
  %vm389 = vcmask 261120
  %v391 = vsel %vm389, %v376, 0
  %v394 = vsel %vm389, %v377, 0
  %396 = vmatprep.subr.mxu0 0.0
  %397 = vmatpush1.msra.mxu0 0.0
  %398 = vmatprep.subr.mxu0 0.0
  %399 = vmatpush1.msra.mxu0 0.0
  %400 = vmatprep.subr.mxu0 0.0
  %401 = vmatpush1.msra.mxu0 0.0
  %402 = vmatprep.subr.mxu0 0.0
  %403 = vmatpush1.msra.mxu0 0.0
  %404 = vmatprep.subr.mxu0 0.0
  %405 = vmatpush1.msra.mxu0 0.0
  %406 = vmatprep.subr.mxu0 0.0
  %407 = vmatpush1.msra.mxu0 0.0
  %408 = vmatprep.subr.mxu0 0.0
  %409 = vmatpush1.msra.mxu0 0.0
  %410 = vmatprep.subr.mxu0 0.0
  %411 = vmatpush1.msra.mxu0 0.0
  %412 = vmatprep.subr.mxu0 0.0
  %413 = vmatpush1.msra.mxu0 0.0
  %414 = vmatprep.subr.mxu0 0.0
  %415 = vmatpush1.msra.mxu0 0.0
  %416 = vmatprep.subr.mxu0 0.0
  %417 = vmatpush1.msra.mxu0 0.0
  %418 = vmatprep.subr.mxu0 0.0
  %419 = vmatpush1.msra.mxu0 0.0
  %420 = vmatprep.subr.mxu0 0.0
  %421 = vmatpush1.msra.mxu0 %v381
  %422 = vmatprep.subr.mxu0 0.0
  %423 = vmatpush1.msra.mxu0 %v380
  %424 = vmatprep.subr.mxu0 0.0
  %425 = vmatpush1.msra.mxu0 %v379
  %426 = vmatprep.subr.mxu0 0.0
  %427 = vmatpush1.msra.mxu0 %v378
  %428 = vmatprep.subr.mxu0 0.0
  %429 = vmatpush2.msra.mxu0 0.0
  %430 = vmatprep.subr.mxu0 0.0
  %431 = vmatpush2.msra.mxu0 0.0
  %432 = vmatprep.subr.mxu0 0.0
  %433 = vmatpush2.msra.mxu0 0.0
  %434 = vmatprep.subr.mxu0 0.0
  %435 = vmatpush2.msra.mxu0 0.0
  %436 = vmatprep.subr.mxu0 0.0
  %437 = vmatpush2.msra.mxu0 0.0
  %438 = vmatprep.subr.mxu0 0.0
  %439 = vmatpush2.msra.mxu0 0.0
  %440 = vmatprep.subr.mxu0 0.0
  %441 = vmatpush2.msra.mxu0 0.0
  %442 = vmatprep.subr.mxu0 0.0
  %443 = vmatpush2.msra.mxu0 0.0
  %444 = vmatprep.subr.mxu0 0.0
  %445 = vmatpush2.msra.mxu0 0.0
  %446 = vmatprep.subr.mxu0 0.0
  %447 = vmatpush2.msra.mxu0 0.0
  %448 = vmatprep.subr.mxu0 0.0
  %449 = vmatpush2.msra.mxu0 0.0
  %450 = vmatprep.subr.mxu0 0.0
  %451 = vmatpush2.msra.mxu0 0.0
  %452 = vmatprep.subr.mxu0 0.0
  %453 = vmatpush2.msra.mxu0 0.0
  %454 = vmatprep.subr.mxu0 0.0
  %455 = vmatpush2.msra.mxu0 0.0
  %456 = vmatprep.subr.mxu0 0.0
  %457 = vmatpush2.msra.mxu0 0.0
  %458 = vmatprep.subr.mxu0 0.0
  %459 = vmatpush2.msra.mxu0 0.0
  %460 = vmatprep.mubr.f32.mxu0 0.0
  %461 = vmatmul.mubr.f32.gmra.mxu0 %v391
  %v462 = vpop.f32.mrf.mxu0
  %v463 = vadd.f32 %v387, %v462
  %v464 = vpop.f32.mrf.mxu0
  %465 = vmatprep.mubr.f32.mxu0 0.0
  %466 = vmatmul.mubr.f32.gmra.mxu0 %v394
  %v467 = vpop.f32.mrf.mxu0
  %v468 = vadd.f32 %v387, %v467
  %v469 = vpop.f32.mrf.mxu0
  %470 = vdwg.mxu0
  %v471 = vmax.f32 %v463, 0.0
  %v472 = vmax.f32 %v468, 0.0
  %v473 = vld [vmem:[%s10] sm:$0xff]
  %v474 = vld [vmem:[%s10 + $0x8] sm:$0xff]
  %v475 = vld [vmem:[%s10 + $0x10] sm:$0xff]
  %v476 = vld [vmem:[%s10 + $0x18] sm:$0xff]
  %v477 = vld [vmem:[%s11] sm:$0x1]
  %v479 = vlaneseq
  %v480 = vshrl.u32 %v479, 7
  %v481 = vsub.s32 0, %v480
  %v482 = vrot.slane %v477, %v481
  %v485 = vsel %vm389, %v471, 0
  %v488 = vsel %vm389, %v472, 0
  %490 = vmatprep.subr.mxu0 0.0
  %491 = vmatpush1.msra.mxu0 0.0
  %492 = vmatprep.subr.mxu0 0.0
  %493 = vmatpush1.msra.mxu0 0.0
  %494 = vmatprep.subr.mxu0 0.0
  %495 = vmatpush1.msra.mxu0 0.0
  %496 = vmatprep.subr.mxu0 0.0
  %497 = vmatpush1.msra.mxu0 0.0
  %498 = vmatprep.subr.mxu0 0.0
  %499 = vmatpush1.msra.mxu0 0.0
  %500 = vmatprep.subr.mxu0 0.0
  %501 = vmatpush1.msra.mxu0 0.0
  %502 = vmatprep.subr.mxu0 0.0
  %503 = vmatpush1.msra.mxu0 0.0
  %504 = vmatprep.subr.mxu0 0.0
  %505 = vmatpush1.msra.mxu0 0.0
  %506 = vmatprep.subr.mxu0 0.0
  %507 = vmatpush1.msra.mxu0 0.0
  %508 = vmatprep.subr.mxu0 0.0
  %509 = vmatpush1.msra.mxu0 0.0
  %510 = vmatprep.subr.mxu0 0.0
  %511 = vmatpush1.msra.mxu0 0.0
  %512 = vmatprep.subr.mxu0 0.0
  %513 = vmatpush1.msra.mxu0 0.0
  %514 = vmatprep.subr.mxu0 0.0
  %515 = vmatpush1.msra.mxu0 %v476
  %516 = vmatprep.subr.mxu0 0.0
  %517 = vmatpush1.msra.mxu0 %v475
  %518 = vmatprep.subr.mxu0 0.0
  %519 = vmatpush1.msra.mxu0 %v474
  %520 = vmatprep.subr.mxu0 0.0
  %521 = vmatpush1.msra.mxu0 %v473
  %522 = vmatprep.subr.mxu0 0.0
  %523 = vmatpush2.msra.mxu0 0.0
  %524 = vmatprep.subr.mxu0 0.0
  %525 = vmatpush2.msra.mxu0 0.0
  %526 = vmatprep.subr.mxu0 0.0
  %527 = vmatpush2.msra.mxu0 0.0
  %528 = vmatprep.subr.mxu0 0.0
  %529 = vmatpush2.msra.mxu0 0.0
  %530 = vmatprep.subr.mxu0 0.0
  %531 = vmatpush2.msra.mxu0 0.0
  %532 = vmatprep.subr.mxu0 0.0
  %533 = vmatpush2.msra.mxu0 0.0
  %534 = vmatprep.subr.mxu0 0.0
  %535 = vmatpush2.msra.mxu0 0.0
  %536 = vmatprep.subr.mxu0 0.0
  %537 = vmatpush2.msra.mxu0 0.0
  %538 = vmatprep.subr.mxu0 0.0
  %539 = vmatpush2.msra.mxu0 0.0
  %540 = vmatprep.subr.mxu0 0.0
  %541 = vmatpush2.msra.mxu0 0.0
  %542 = vmatprep.subr.mxu0 0.0
  %543 = vmatpush2.msra.mxu0 0.0
  %544 = vmatprep.subr.mxu0 0.0
  %545 = vmatpush2.msra.mxu0 0.0
  %546 = vmatprep.subr.mxu0 0.0
  %547 = vmatpush2.msra.mxu0 0.0
  %548 = vmatprep.subr.mxu0 0.0
  %549 = vmatpush2.msra.mxu0 0.0
  %550 = vmatprep.subr.mxu0 0.0
  %551 = vmatpush2.msra.mxu0 0.0
  %552 = vmatprep.subr.mxu0 0.0
  %553 = vmatpush2.msra.mxu0 0.0
  %554 = vmatprep.mubr.f32.mxu0 0.0
  %555 = vmatmul.mubr.f32.gmra.mxu0 %v485
  %v556 = vpop.f32.mrf.mxu0
  %v557 = vadd.f32 %v482, %v556
  %v558 = vpop.f32.mrf.mxu0
  %559 = vmatprep.mubr.f32.mxu0 0.0
  %560 = vmatmul.mubr.f32.gmra.mxu0 %v488
  %v561 = vpop.f32.mrf.mxu0
  %v562 = vadd.f32 %v482, %v561
  %v563 = vpop.f32.mrf.mxu0
  %564 = vdwg.mxu0
  %vm565 = vcmp.gt.f32.partialorder %v557, 0.0
  %vm566 = vcmp.gt.f32.partialorder %v562, 0.0
  %v567 = vmul.f32 %v557, 0.1
  %v568 = vmul.f32 %v562, 0.1
  %v569 = vsel %vm565, %v557, %v567
  %v570 = vsel %vm566, %v562, %v568
  %v572 = vsel %vm188, %v76, 0
  %574 = vmatprep.subr.mxu0 0.0
  %575 = vmatpush1.msra.mxu0 0.0
  %576 = vmatprep.subr.mxu0 0.0
  %577 = vmatpush1.msra.mxu0 0.0
  %578 = vmatprep.subr.mxu0 0.0
  %579 = vmatpush1.msra.mxu0 0.0
  %580 = vmatprep.subr.mxu0 0.0
  %581 = vmatpush1.msra.mxu0 0.0
  %582 = vmatprep.subr.mxu0 0.0
  %583 = vmatpush1.msra.mxu0 0.0
  %584 = vmatprep.subr.mxu0 0.0
  %585 = vmatpush1.msra.mxu0 0.0
  %586 = vmatprep.subr.mxu0 0.0
  %587 = vmatpush1.msra.mxu0 0.0
  %588 = vmatprep.subr.mxu0 0.0
  %589 = vmatpush1.msra.mxu0 0.0
  %590 = vmatprep.subr.mxu0 0.0
  %591 = vmatpush1.msra.mxu0 0.0
  %592 = vmatprep.subr.mxu0 0.0
  %593 = vmatpush1.msra.mxu0 0.0
  %594 = vmatprep.subr.mxu0 0.0
  %595 = vmatpush1.msra.mxu0 0.0
  %596 = vmatprep.subr.mxu0 0.0
  %597 = vmatpush1.msra.mxu0 0.0
  %598 = vmatprep.subr.mxu0 0.0
  %599 = vmatpush1.msra.mxu0 0.0
  %600 = vmatprep.subr.mxu0 0.0
  %601 = vmatpush1.msra.mxu0 0.0
  %602 = vmatprep.subr.mxu0 0.0
  %603 = vmatpush1.msra.mxu0 %v570
  %604 = vmatprep.subr.mxu0 0.0
  %605 = vmatpush1.msra.mxu0 %v569
  %606 = vmatprep.subr.mxu0 0.0
  %607 = vmatpush2.msra.mxu0 0.0
  %608 = vmatprep.subr.mxu0 0.0
  %609 = vmatpush2.msra.mxu0 0.0
  %610 = vmatprep.subr.mxu0 0.0
  %611 = vmatpush2.msra.mxu0 0.0
  %612 = vmatprep.subr.mxu0 0.0
  %613 = vmatpush2.msra.mxu0 0.0
  %614 = vmatprep.subr.mxu0 0.0
  %615 = vmatpush2.msra.mxu0 0.0
  %616 = vmatprep.subr.mxu0 0.0
  %617 = vmatpush2.msra.mxu0 0.0
  %618 = vmatprep.subr.mxu0 0.0
  %619 = vmatpush2.msra.mxu0 0.0
  %620 = vmatprep.subr.mxu0 0.0
  %621 = vmatpush2.msra.mxu0 0.0
  %622 = vmatprep.subr.mxu0 0.0
  %623 = vmatpush2.msra.mxu0 0.0
  %624 = vmatprep.subr.mxu0 0.0
  %625 = vmatpush2.msra.mxu0 0.0
  %626 = vmatprep.subr.mxu0 0.0
  %627 = vmatpush2.msra.mxu0 0.0
  %628 = vmatprep.subr.mxu0 0.0
  %629 = vmatpush2.msra.mxu0 0.0
  %630 = vmatprep.subr.mxu0 0.0
  %631 = vmatpush2.msra.mxu0 0.0
  %632 = vmatprep.subr.mxu0 0.0
  %633 = vmatpush2.msra.mxu0 0.0
  %634 = vmatprep.subr.mxu0 0.0
  %635 = vmatpush2.msra.mxu0 0.0
  %636 = vmatprep.subr.mxu0 0.0
  %637 = vmatpush2.msra.mxu0 0.0
  %638 = vmatprep.mubr.f32.mxu0 0.0
  %639 = vmatmul.mubr.f32.gmra.mxu0 %v572
  %v640 = vpop.f32.mrf.mxu0
  %v641 = vadd.f32 %v73, %v640
  %v642 = vpop.f32.mrf.mxu0
  %643 = vdwg.mxu0
  %v644 = vld [vmem:[%s12] sm:$0xff]
  %v645 = vld [vmem:[%s12 + $0x8] sm:$0xff]
  %v646 = vld [vmem:[%s12 + $0x10] sm:$0xff]
  %v647 = vld [vmem:[%s12 + $0x18] sm:$0xff]
  %v648 = vld [vmem:[%s13] sm:$0x1]
  %v650 = vlaneseq
  %v651 = vshrl.u32 %v650, 7
  %v652 = vsub.s32 0, %v651
  %v653 = vrot.slane %v648, %v652
  %v656 = vsel %vm389, %v641, 0
  %658 = vmatprep.subr.mxu0 0.0
  %659 = vmatpush1.msra.mxu0 0.0
  %660 = vmatprep.subr.mxu0 0.0
  %661 = vmatpush1.msra.mxu0 0.0
  %662 = vmatprep.subr.mxu0 0.0
  %663 = vmatpush1.msra.mxu0 0.0
  %664 = vmatprep.subr.mxu0 0.0
  %665 = vmatpush1.msra.mxu0 0.0
  %666 = vmatprep.subr.mxu0 0.0
  %667 = vmatpush1.msra.mxu0 0.0
  %668 = vmatprep.subr.mxu0 0.0
  %669 = vmatpush1.msra.mxu0 0.0
  %670 = vmatprep.subr.mxu0 0.0
  %671 = vmatpush1.msra.mxu0 0.0
  %672 = vmatprep.subr.mxu0 0.0
  %673 = vmatpush1.msra.mxu0 0.0
  %674 = vmatprep.subr.mxu0 0.0
  %675 = vmatpush1.msra.mxu0 0.0
  %676 = vmatprep.subr.mxu0 0.0
  %677 = vmatpush1.msra.mxu0 0.0
  %678 = vmatprep.subr.mxu0 0.0
  %679 = vmatpush1.msra.mxu0 0.0
  %680 = vmatprep.subr.mxu0 0.0
  %681 = vmatpush1.msra.mxu0 0.0
  %682 = vmatprep.subr.mxu0 0.0
  %683 = vmatpush1.msra.mxu0 %v647
  %684 = vmatprep.subr.mxu0 0.0
  %685 = vmatpush1.msra.mxu0 %v646
  %686 = vmatprep.subr.mxu0 0.0
  %687 = vmatpush1.msra.mxu0 %v645
  %688 = vmatprep.subr.mxu0 0.0
  %689 = vmatpush1.msra.mxu0 %v644
  %690 = vmatprep.subr.mxu0 0.0
  %691 = vmatpush2.msra.mxu0 0.0
  %692 = vmatprep.subr.mxu0 0.0
  %693 = vmatpush2.msra.mxu0 0.0
  %694 = vmatprep.subr.mxu0 0.0
  %695 = vmatpush2.msra.mxu0 0.0
  %696 = vmatprep.subr.mxu0 0.0
  %697 = vmatpush2.msra.mxu0 0.0
  %698 = vmatprep.subr.mxu0 0.0
  %699 = vmatpush2.msra.mxu0 0.0
  %700 = vmatprep.subr.mxu0 0.0
  %701 = vmatpush2.msra.mxu0 0.0
  %702 = vmatprep.subr.mxu0 0.0
  %703 = vmatpush2.msra.mxu0 0.0
  %704 = vmatprep.subr.mxu0 0.0
  %705 = vmatpush2.msra.mxu0 0.0
  %706 = vmatprep.subr.mxu0 0.0
  %707 = vmatpush2.msra.mxu0 0.0
  %708 = vmatprep.subr.mxu0 0.0
  %709 = vmatpush2.msra.mxu0 0.0
  %710 = vmatprep.subr.mxu0 0.0
  %711 = vmatpush2.msra.mxu0 0.0
  %712 = vmatprep.subr.mxu0 0.0
  %713 = vmatpush2.msra.mxu0 0.0
  %714 = vmatprep.subr.mxu0 0.0
  %715 = vmatpush2.msra.mxu0 0.0
  %716 = vmatprep.subr.mxu0 0.0
  %717 = vmatpush2.msra.mxu0 0.0
  %718 = vmatprep.subr.mxu0 0.0
  %719 = vmatpush2.msra.mxu0 0.0
  %720 = vmatprep.subr.mxu0 0.0
  %721 = vmatpush2.msra.mxu0 0.0
  %722 = vmatprep.mubr.f32.mxu0 0.0
  %723 = vmatmul.mubr.f32.gmra.mxu0 %v656
  %v724 = vpop.f32.mrf.mxu0
  %v725 = vadd.f32 %v653, %v724
  %v726 = vpop.f32.mrf.mxu0
  %727 = vdwg.mxu0
  %v728 = vmax.f32 %v725, 0.0
  %v729 = vld [vmem:[%s14] sm:$0xff]
  %v730 = vld [vmem:[%s14 + $0x8] sm:$0xff]
  %v731 = vld [vmem:[%s14 + $0x10] sm:$0xff]
  %v732 = vld [vmem:[%s14 + $0x18] sm:$0xff]
  %v733 = vld [vmem:[%s15] sm:$0x1]
  %v735 = vlaneseq
  %v736 = vshrl.u32 %v735, 7
  %v737 = vsub.s32 0, %v736
  %v738 = vrot.slane %v733, %v737
  %v741 = vsel %vm389, %v728, 0
  %743 = vmatprep.subr.mxu0 0.0
  %744 = vmatpush1.msra.mxu0 0.0
  %745 = vmatprep.subr.mxu0 0.0
  %746 = vmatpush1.msra.mxu0 0.0
  %747 = vmatprep.subr.mxu0 0.0
  %748 = vmatpush1.msra.mxu0 0.0
  %749 = vmatprep.subr.mxu0 0.0
  %750 = vmatpush1.msra.mxu0 0.0
  %751 = vmatprep.subr.mxu0 0.0
  %752 = vmatpush1.msra.mxu0 0.0
  %753 = vmatprep.subr.mxu0 0.0
  %754 = vmatpush1.msra.mxu0 0.0
  %755 = vmatprep.subr.mxu0 0.0
  %756 = vmatpush1.msra.mxu0 0.0
  %757 = vmatprep.subr.mxu0 0.0
  %758 = vmatpush1.msra.mxu0 0.0
  %759 = vmatprep.subr.mxu0 0.0
  %760 = vmatpush1.msra.mxu0 0.0
  %761 = vmatprep.subr.mxu0 0.0
  %762 = vmatpush1.msra.mxu0 0.0
  %763 = vmatprep.subr.mxu0 0.0
  %764 = vmatpush1.msra.mxu0 0.0
  %765 = vmatprep.subr.mxu0 0.0
  %766 = vmatpush1.msra.mxu0 0.0
  %767 = vmatprep.subr.mxu0 0.0
  %768 = vmatpush1.msra.mxu0 %v732
  %769 = vmatprep.subr.mxu0 0.0
  %770 = vmatpush1.msra.mxu0 %v731
  %771 = vmatprep.subr.mxu0 0.0
  %772 = vmatpush1.msra.mxu0 %v730
  %773 = vmatprep.subr.mxu0 0.0
  %774 = vmatpush1.msra.mxu0 %v729
  %775 = vmatprep.subr.mxu0 0.0
  %776 = vmatpush2.msra.mxu0 0.0
  %777 = vmatprep.subr.mxu0 0.0
  %778 = vmatpush2.msra.mxu0 0.0
  %779 = vmatprep.subr.mxu0 0.0
  %780 = vmatpush2.msra.mxu0 0.0
  %781 = vmatprep.subr.mxu0 0.0
  %782 = vmatpush2.msra.mxu0 0.0
  %783 = vmatprep.subr.mxu0 0.0
  %784 = vmatpush2.msra.mxu0 0.0
  %785 = vmatprep.subr.mxu0 0.0
  %786 = vmatpush2.msra.mxu0 0.0
  %787 = vmatprep.subr.mxu0 0.0
  %788 = vmatpush2.msra.mxu0 0.0
  %789 = vmatprep.subr.mxu0 0.0
  %790 = vmatpush2.msra.mxu0 0.0
  %791 = vmatprep.subr.mxu0 0.0
  %792 = vmatpush2.msra.mxu0 0.0
  %793 = vmatprep.subr.mxu0 0.0
  %794 = vmatpush2.msra.mxu0 0.0
  %795 = vmatprep.subr.mxu0 0.0
  %796 = vmatpush2.msra.mxu0 0.0
  %797 = vmatprep.subr.mxu0 0.0
  %798 = vmatpush2.msra.mxu0 0.0
  %799 = vmatprep.subr.mxu0 0.0
  %800 = vmatpush2.msra.mxu0 0.0
  %801 = vmatprep.subr.mxu0 0.0
  %802 = vmatpush2.msra.mxu0 0.0
  %803 = vmatprep.subr.mxu0 0.0
  %804 = vmatpush2.msra.mxu0 0.0
  %805 = vmatprep.subr.mxu0 0.0
  %806 = vmatpush2.msra.mxu0 0.0
  %807 = vmatprep.mubr.f32.mxu0 0.0
  %808 = vmatmul.mubr.f32.gmra.mxu0 %v741
  %v809 = vpop.f32.mrf.mxu0
  %v810 = vadd.f32 %v738, %v809
  %v811 = vpop.f32.mrf.mxu0
  %812 = vdwg.mxu0
  %v813 = vmax.f32 %v810, 0.0
  %814 = vmatprep.subr.mxu0 0.0
  %815 = vmatpush1.msra.mxu0 0.0
  %816 = vmatprep.subr.mxu0 0.0
  %817 = vmatpush1.msra.mxu0 0.0
  %818 = vmatprep.subr.mxu0 0.0
  %819 = vmatpush1.msra.mxu0 0.0
  %820 = vmatprep.subr.mxu0 0.0
  %821 = vmatpush1.msra.mxu0 0.0
  %822 = vmatprep.subr.mxu0 0.0
  %823 = vmatpush1.msra.mxu0 0.0
  %824 = vmatprep.subr.mxu0 0.0
  %825 = vmatpush1.msra.mxu0 0.0
  %826 = vmatprep.subr.mxu0 0.0
  %827 = vmatpush1.msra.mxu0 0.0
  %828 = vmatprep.subr.mxu0 0.0
  %829 = vmatpush1.msra.mxu0 0.0
  %830 = vmatprep.subr.mxu0 0.0
  %831 = vmatpush1.msra.mxu0 0.0
  %832 = vmatprep.subr.mxu0 0.0
  %833 = vmatpush1.msra.mxu0 0.0
  %834 = vmatprep.subr.mxu0 0.0
  %835 = vmatpush1.msra.mxu0 0.0
  %836 = vmatprep.subr.mxu0 0.0
  %837 = vmatpush1.msra.mxu0 0.0
  %838 = vmatprep.subr.mxu0 0.0
  %839 = vmatpush1.msra.mxu0 0.0
  %840 = vmatprep.subr.mxu0 0.0
  %841 = vmatpush1.msra.mxu0 0.0
  %842 = vmatprep.subr.mxu0 0.0
  %843 = vmatpush1.msra.mxu0 0.0
  %844 = vmatprep.subr.mxu0 0.0
  %845 = vmatpush1.msra.mxu0 %v813
  %846 = vmatprep.subr.mxu0 0.0
  %847 = vmatpush2.msra.mxu0 0.0
  %848 = vmatprep.subr.mxu0 0.0
  %849 = vmatpush2.msra.mxu0 0.0
  %850 = vmatprep.subr.mxu0 0.0
  %851 = vmatpush2.msra.mxu0 0.0
  %852 = vmatprep.subr.mxu0 0.0
  %853 = vmatpush2.msra.mxu0 0.0
  %854 = vmatprep.subr.mxu0 0.0
  %855 = vmatpush2.msra.mxu0 0.0
  %856 = vmatprep.subr.mxu0 0.0
  %857 = vmatpush2.msra.mxu0 0.0
  %858 = vmatprep.subr.mxu0 0.0
  %859 = vmatpush2.msra.mxu0 0.0
  %860 = vmatprep.subr.mxu0 0.0
  %861 = vmatpush2.msra.mxu0 0.0
  %862 = vmatprep.subr.mxu0 0.0
  %863 = vmatpush2.msra.mxu0 0.0
  %864 = vmatprep.subr.mxu0 0.0
  %865 = vmatpush2.msra.mxu0 0.0
  %866 = vmatprep.subr.mxu0 0.0
  %867 = vmatpush2.msra.mxu0 0.0
  %868 = vmatprep.subr.mxu0 0.0
  %869 = vmatpush2.msra.mxu0 0.0
  %870 = vmatprep.subr.mxu0 0.0
  %871 = vmatpush2.msra.mxu0 0.0
  %872 = vmatprep.subr.mxu0 0.0
  %873 = vmatpush2.msra.mxu0 0.0
  %874 = vmatprep.subr.mxu0 0.0
  %875 = vmatpush2.msra.mxu0 0.0
  %876 = vmatprep.subr.mxu0 0.0
  %877 = vmatpush2.msra.mxu0 0.0
  %878 = vmatprep.mubr.f32.mxu0 0.0
  %879 = vmatmul.mubr.f32.gmra.mxu0 %v79
  %v880 = vpop.f32.mrf.mxu0
  %v881 = vadd.f32 0.0, %v880
  %v882 = vpop.f32.mrf.mxu0
  %883 = vmatprep.mubr.f32.mxu0 0.0
  %884 = vmatmul.mubr.f32.gmra.mxu0 %v82
  %v885 = vpop.f32.mrf.mxu0
  %v886 = vadd.f32 0.0, %v885
  %v887 = vpop.f32.mrf.mxu0
  %888 = vdwg.mxu0
  %v889 = vadd.f32 %v569, %v881
  %v890 = vadd.f32 %v570, %v886
  %891 = vmatprep.subr.mxu0 0.0
  %892 = vmatpush1.msra.mxu0 0.0
  %893 = vmatprep.subr.mxu0 0.0
  %894 = vmatpush1.msra.mxu0 0.0
  %895 = vmatprep.subr.mxu0 0.0
  %896 = vmatpush1.msra.mxu0 0.0
  %897 = vmatprep.subr.mxu0 0.0
  %898 = vmatpush1.msra.mxu0 0.0
  %899 = vmatprep.subr.mxu0 0.0
  %900 = vmatpush1.msra.mxu0 0.0
  %901 = vmatprep.subr.mxu0 0.0
  %902 = vmatpush1.msra.mxu0 0.0
  %903 = vmatprep.subr.mxu0 0.0
  %904 = vmatpush1.msra.mxu0 0.0
  %905 = vmatprep.subr.mxu0 0.0
  %906 = vmatpush1.msra.mxu0 0.0
  %907 = vmatprep.subr.mxu0 0.0
  %908 = vmatpush1.msra.mxu0 0.0
  %909 = vmatprep.subr.mxu0 0.0
  %910 = vmatpush1.msra.mxu0 0.0
  %911 = vmatprep.subr.mxu0 0.0
  %912 = vmatpush1.msra.mxu0 0.0
  %913 = vmatprep.subr.mxu0 0.0
  %914 = vmatpush1.msra.mxu0 0.0
  %915 = vmatprep.subr.mxu0 0.0
  %916 = vmatpush1.msra.mxu0 0.0
  %917 = vmatprep.subr.mxu0 0.0
  %918 = vmatpush1.msra.mxu0 0.0
  %919 = vmatprep.subr.mxu0 0.0
  %920 = vmatpush1.msra.mxu0 %v890
  %921 = vmatprep.subr.mxu0 0.0
  %922 = vmatpush1.msra.mxu0 %v889
  %923 = vmatprep.subr.mxu0 0.0
  %924 = vmatpush2.msra.mxu0 0.0
  %925 = vmatprep.subr.mxu0 0.0
  %926 = vmatpush2.msra.mxu0 0.0
  %927 = vmatprep.subr.mxu0 0.0
  %928 = vmatpush2.msra.mxu0 0.0
  %929 = vmatprep.subr.mxu0 0.0
  %930 = vmatpush2.msra.mxu0 0.0
  %931 = vmatprep.subr.mxu0 0.0
  %932 = vmatpush2.msra.mxu0 0.0
  %933 = vmatprep.subr.mxu0 0.0
  %934 = vmatpush2.msra.mxu0 0.0
  %935 = vmatprep.subr.mxu0 0.0
  %936 = vmatpush2.msra.mxu0 0.0
  %937 = vmatprep.subr.mxu0 0.0
  %938 = vmatpush2.msra.mxu0 0.0
  %939 = vmatprep.subr.mxu0 0.0
  %940 = vmatpush2.msra.mxu0 0.0
  %941 = vmatprep.subr.mxu0 0.0
  %942 = vmatpush2.msra.mxu0 0.0
  %943 = vmatprep.subr.mxu0 0.0
  %944 = vmatpush2.msra.mxu0 0.0
  %945 = vmatprep.subr.mxu0 0.0
  %946 = vmatpush2.msra.mxu0 0.0
  %947 = vmatprep.subr.mxu0 0.0
  %948 = vmatpush2.msra.mxu0 0.0
  %949 = vmatprep.subr.mxu0 0.0
  %950 = vmatpush2.msra.mxu0 0.0
  %951 = vmatprep.subr.mxu0 0.0
  %952 = vmatpush2.msra.mxu0 0.0
  %953 = vmatprep.subr.mxu0 0.0
  %954 = vmatpush2.msra.mxu0 0.0
  %955 = vmatprep.mubr.f32.mxu0 0.0
  %956 = vmatmul.mubr.f32.gmra.mxu0 %v190
  %v957 = vpop.f32.mrf.mxu0
  %v958 = vadd.f32 %v185, %v957
  %v959 = vpop.f32.mrf.mxu0
  %960 = vmatprep.mubr.f32.mxu0 0.0
  %961 = vmatmul.mubr.f32.gmra.mxu0 %v193
  %v962 = vpop.f32.mrf.mxu0
  %v963 = vadd.f32 %v186, %v962
  %v964 = vpop.f32.mrf.mxu0
  %965 = vmatprep.mubr.f32.mxu0 0.0
  %966 = vmatmul.mubr.f32.gmra.mxu0 %v196
  %v967 = vpop.f32.mrf.mxu0
  %v968 = vadd.f32 %v187, %v967
  %v969 = vpop.f32.mrf.mxu0
  %970 = vdwg.mxu0
  %v971 = vmax.f32 %v958, 0.0
  %v972 = vmax.f32 %v963, 0.0
  %v973 = vmax.f32 %v968, 0.0
  %974 = vmatprep.subr.mxu0 0.0
  %975 = vmatpush1.msra.mxu0 0.0
  %976 = vmatprep.subr.mxu0 0.0
  %977 = vmatpush1.msra.mxu0 0.0
  %978 = vmatprep.subr.mxu0 0.0
  %979 = vmatpush1.msra.mxu0 0.0
  %980 = vmatprep.subr.mxu0 0.0
  %981 = vmatpush1.msra.mxu0 0.0
  %982 = vmatprep.subr.mxu0 0.0
  %983 = vmatpush1.msra.mxu0 0.0
  %984 = vmatprep.subr.mxu0 0.0
  %985 = vmatpush1.msra.mxu0 0.0
  %986 = vmatprep.subr.mxu0 0.0
  %987 = vmatpush1.msra.mxu0 0.0
  %988 = vmatprep.subr.mxu0 0.0
  %989 = vmatpush1.msra.mxu0 0.0
  %990 = vmatprep.subr.mxu0 0.0
  %991 = vmatpush1.msra.mxu0 0.0
  %992 = vmatprep.subr.mxu0 0.0
  %993 = vmatpush1.msra.mxu0 0.0
  %994 = vmatprep.subr.mxu0 0.0
  %995 = vmatpush1.msra.mxu0 0.0
  %996 = vmatprep.subr.mxu0 0.0
  %997 = vmatpush1.msra.mxu0 0.0
  %998 = vmatprep.subr.mxu0 0.0
  %999 = vmatpush1.msra.mxu0 0.0
  %1000 = vmatprep.subr.mxu0 0.0
  %1001 = vmatpush1.msra.mxu0 %v973
  %1002 = vmatprep.subr.mxu0 0.0
  %1003 = vmatpush1.msra.mxu0 %v972
  %1004 = vmatprep.subr.mxu0 0.0
  %1005 = vmatpush1.msra.mxu0 %v971
  %1006 = vmatprep.subr.mxu0 0.0
  %1007 = vmatpush2.msra.mxu0 0.0
  %1008 = vmatprep.subr.mxu0 0.0
  %1009 = vmatpush2.msra.mxu0 0.0
  %1010 = vmatprep.subr.mxu0 0.0
  %1011 = vmatpush2.msra.mxu0 0.0
  %1012 = vmatprep.subr.mxu0 0.0
  %1013 = vmatpush2.msra.mxu0 0.0
  %1014 = vmatprep.subr.mxu0 0.0
  %1015 = vmatpush2.msra.mxu0 0.0
  %1016 = vmatprep.subr.mxu0 0.0
  %1017 = vmatpush2.msra.mxu0 0.0
  %1018 = vmatprep.subr.mxu0 0.0
  %1019 = vmatpush2.msra.mxu0 0.0
  %1020 = vmatprep.subr.mxu0 0.0
  %1021 = vmatpush2.msra.mxu0 0.0
  %1022 = vmatprep.subr.mxu0 0.0
  %1023 = vmatpush2.msra.mxu0 0.0
  %1024 = vmatprep.subr.mxu0 0.0
  %1025 = vmatpush2.msra.mxu0 0.0
  %1026 = vmatprep.subr.mxu0 0.0
  %1027 = vmatpush2.msra.mxu0 0.0
  %1028 = vmatprep.subr.mxu0 0.0
  %1029 = vmatpush2.msra.mxu0 0.0
  %1030 = vmatprep.subr.mxu0 0.0
  %1031 = vmatpush2.msra.mxu0 0.0
  %1032 = vmatprep.subr.mxu0 0.0
  %1033 = vmatpush2.msra.mxu0 0.0
  %1034 = vmatprep.subr.mxu0 0.0
  %1035 = vmatpush2.msra.mxu0 0.0
  %1036 = vmatprep.subr.mxu0 0.0
  %1037 = vmatpush2.msra.mxu0 0.0
  %1038 = vmatprep.mubr.f32.mxu0 0.0
  %1039 = vmatmul.mubr.f32.gmra.mxu0 %v296
  %v1040 = vpop.f32.mrf.mxu0
  %v1041 = vadd.f32 0.0, %v1040
  %v1042 = vpop.f32.mrf.mxu0
  %1043 = vmatprep.mubr.f32.mxu0 0.0
  %1044 = vmatmul.mubr.f32.gmra.mxu0 %v299
  %v1045 = vpop.f32.mrf.mxu0
  %v1046 = vadd.f32 0.0, %v1045
  %v1047 = vpop.f32.mrf.mxu0
  %1048 = vdwg.mxu0
  %v1049 = vadd.f32 %v889, %v1041
  %v1050 = vadd.f32 %v890, %v1046
  %s1051 = scalar_lea.vmem %s8, 32
  %v1052 = vld [vmem:[%s1051] sm:$0xff]
  %v1053 = vld [vmem:[%s1051 + $0x8] sm:$0xff]
  %v1054 = vld [vmem:[%s1051 + $0x10] sm:$0xff]
  %v1055 = vld [vmem:[%s1051 + $0x18] sm:$0xff]
  %s1056 = scalar_lea.vmem %s9, 1
  %v1057 = vld [vmem:[%s1056] sm:$0x1]
  %v1059 = vlaneseq
  %v1060 = vshrl.u32 %v1059, 7
  %v1061 = vsub.s32 0, %v1060
  %v1062 = vrot.slane %v1057, %v1061
  %v1065 = vsel %vm389, %v1049, 0
  %v1068 = vsel %vm389, %v1050, 0
  %1070 = vmatprep.subr.mxu0 0.0
  %1071 = vmatpush1.msra.mxu0 0.0
  %1072 = vmatprep.subr.mxu0 0.0
  %1073 = vmatpush1.msra.mxu0 0.0
  %1074 = vmatprep.subr.mxu0 0.0
  %1075 = vmatpush1.msra.mxu0 0.0
  %1076 = vmatprep.subr.mxu0 0.0
  %1077 = vmatpush1.msra.mxu0 0.0
  %1078 = vmatprep.subr.mxu0 0.0
  %1079 = vmatpush1.msra.mxu0 0.0
  %1080 = vmatprep.subr.mxu0 0.0
  %1081 = vmatpush1.msra.mxu0 0.0
  %1082 = vmatprep.subr.mxu0 0.0
  %1083 = vmatpush1.msra.mxu0 0.0
  %1084 = vmatprep.subr.mxu0 0.0
  %1085 = vmatpush1.msra.mxu0 0.0
  %1086 = vmatprep.subr.mxu0 0.0
  %1087 = vmatpush1.msra.mxu0 0.0
  %1088 = vmatprep.subr.mxu0 0.0
  %1089 = vmatpush1.msra.mxu0 0.0
  %1090 = vmatprep.subr.mxu0 0.0
  %1091 = vmatpush1.msra.mxu0 0.0
  %1092 = vmatprep.subr.mxu0 0.0
  %1093 = vmatpush1.msra.mxu0 0.0
  %1094 = vmatprep.subr.mxu0 0.0
  %1095 = vmatpush1.msra.mxu0 %v1055
  %1096 = vmatprep.subr.mxu0 0.0
  %1097 = vmatpush1.msra.mxu0 %v1054
  %1098 = vmatprep.subr.mxu0 0.0
  %1099 = vmatpush1.msra.mxu0 %v1053
  %1100 = vmatprep.subr.mxu0 0.0
  %1101 = vmatpush1.msra.mxu0 %v1052
  %1102 = vmatprep.subr.mxu0 0.0
  %1103 = vmatpush2.msra.mxu0 0.0
  %1104 = vmatprep.subr.mxu0 0.0
  %1105 = vmatpush2.msra.mxu0 0.0
  %1106 = vmatprep.subr.mxu0 0.0
  %1107 = vmatpush2.msra.mxu0 0.0
  %1108 = vmatprep.subr.mxu0 0.0
  %1109 = vmatpush2.msra.mxu0 0.0
  %1110 = vmatprep.subr.mxu0 0.0
  %1111 = vmatpush2.msra.mxu0 0.0
  %1112 = vmatprep.subr.mxu0 0.0
  %1113 = vmatpush2.msra.mxu0 0.0
  %1114 = vmatprep.subr.mxu0 0.0
  %1115 = vmatpush2.msra.mxu0 0.0
  %1116 = vmatprep.subr.mxu0 0.0
  %1117 = vmatpush2.msra.mxu0 0.0
  %1118 = vmatprep.subr.mxu0 0.0
  %1119 = vmatpush2.msra.mxu0 0.0
  %1120 = vmatprep.subr.mxu0 0.0
  %1121 = vmatpush2.msra.mxu0 0.0
  %1122 = vmatprep.subr.mxu0 0.0
  %1123 = vmatpush2.msra.mxu0 0.0
  %1124 = vmatprep.subr.mxu0 0.0
  %1125 = vmatpush2.msra.mxu0 0.0
  %1126 = vmatprep.subr.mxu0 0.0
  %1127 = vmatpush2.msra.mxu0 0.0
  %1128 = vmatprep.subr.mxu0 0.0
  %1129 = vmatpush2.msra.mxu0 0.0
  %1130 = vmatprep.subr.mxu0 0.0
  %1131 = vmatpush2.msra.mxu0 0.0
  %1132 = vmatprep.subr.mxu0 0.0
  %1133 = vmatpush2.msra.mxu0 0.0
  %1134 = vmatprep.mubr.f32.mxu0 0.0
  %1135 = vmatmul.mubr.f32.gmra.mxu0 %v1065
  %v1136 = vpop.f32.mrf.mxu0
  %v1137 = vadd.f32 %v1062, %v1136
  %v1138 = vpop.f32.mrf.mxu0
  %1139 = vmatprep.mubr.f32.mxu0 0.0
  %1140 = vmatmul.mubr.f32.gmra.mxu0 %v1068
  %v1141 = vpop.f32.mrf.mxu0
  %v1142 = vadd.f32 %v1062, %v1141
  %v1143 = vpop.f32.mrf.mxu0
  %1144 = vdwg.mxu0
  %v1145 = vmax.f32 %v1137, 0.0
  %v1146 = vmax.f32 %v1142, 0.0
  %s1147 = scalar_lea.vmem %s10, 32
  %v1148 = vld [vmem:[%s1147] sm:$0xff]
  %v1149 = vld [vmem:[%s1147 + $0x8] sm:$0xff]
  %v1150 = vld [vmem:[%s1147 + $0x10] sm:$0xff]
  %v1151 = vld [vmem:[%s1147 + $0x18] sm:$0xff]
  %s1152 = scalar_lea.vmem %s11, 1
  %v1153 = vld [vmem:[%s1152] sm:$0x1]
  %v1155 = vlaneseq
  %v1156 = vshrl.u32 %v1155, 7
  %v1157 = vsub.s32 0, %v1156
  %v1158 = vrot.slane %v1153, %v1157
  %v1161 = vsel %vm389, %v1145, 0
  %v1164 = vsel %vm389, %v1146, 0
  %1166 = vmatprep.subr.mxu0 0.0
  %1167 = vmatpush1.msra.mxu0 0.0
  %1168 = vmatprep.subr.mxu0 0.0
  %1169 = vmatpush1.msra.mxu0 0.0
  %1170 = vmatprep.subr.mxu0 0.0
  %1171 = vmatpush1.msra.mxu0 0.0
  %1172 = vmatprep.subr.mxu0 0.0
  %1173 = vmatpush1.msra.mxu0 0.0
  %1174 = vmatprep.subr.mxu0 0.0
  %1175 = vmatpush1.msra.mxu0 0.0
  %1176 = vmatprep.subr.mxu0 0.0
  %1177 = vmatpush1.msra.mxu0 0.0
  %1178 = vmatprep.subr.mxu0 0.0
  %1179 = vmatpush1.msra.mxu0 0.0
  %1180 = vmatprep.subr.mxu0 0.0
  %1181 = vmatpush1.msra.mxu0 0.0
  %1182 = vmatprep.subr.mxu0 0.0
  %1183 = vmatpush1.msra.mxu0 0.0
  %1184 = vmatprep.subr.mxu0 0.0
  %1185 = vmatpush1.msra.mxu0 0.0
  %1186 = vmatprep.subr.mxu0 0.0
  %1187 = vmatpush1.msra.mxu0 0.0
  %1188 = vmatprep.subr.mxu0 0.0
  %1189 = vmatpush1.msra.mxu0 0.0
  %1190 = vmatprep.subr.mxu0 0.0
  %1191 = vmatpush1.msra.mxu0 %v1151
  %1192 = vmatprep.subr.mxu0 0.0
  %1193 = vmatpush1.msra.mxu0 %v1150
  %1194 = vmatprep.subr.mxu0 0.0
  %1195 = vmatpush1.msra.mxu0 %v1149
  %1196 = vmatprep.subr.mxu0 0.0
  %1197 = vmatpush1.msra.mxu0 %v1148
  %1198 = vmatprep.subr.mxu0 0.0
  %1199 = vmatpush2.msra.mxu0 0.0
  %1200 = vmatprep.subr.mxu0 0.0
  %1201 = vmatpush2.msra.mxu0 0.0
  %1202 = vmatprep.subr.mxu0 0.0
  %1203 = vmatpush2.msra.mxu0 0.0
  %1204 = vmatprep.subr.mxu0 0.0
  %1205 = vmatpush2.msra.mxu0 0.0
  %1206 = vmatprep.subr.mxu0 0.0
  %1207 = vmatpush2.msra.mxu0 0.0
  %1208 = vmatprep.subr.mxu0 0.0
  %1209 = vmatpush2.msra.mxu0 0.0
  %1210 = vmatprep.subr.mxu0 0.0
  %1211 = vmatpush2.msra.mxu0 0.0
  %1212 = vmatprep.subr.mxu0 0.0
  %1213 = vmatpush2.msra.mxu0 0.0
  %1214 = vmatprep.subr.mxu0 0.0
  %1215 = vmatpush2.msra.mxu0 0.0
  %1216 = vmatprep.subr.mxu0 0.0
  %1217 = vmatpush2.msra.mxu0 0.0
  %1218 = vmatprep.subr.mxu0 0.0
  %1219 = vmatpush2.msra.mxu0 0.0
  %1220 = vmatprep.subr.mxu0 0.0
  %1221 = vmatpush2.msra.mxu0 0.0
  %1222 = vmatprep.subr.mxu0 0.0
  %1223 = vmatpush2.msra.mxu0 0.0
  %1224 = vmatprep.subr.mxu0 0.0
  %1225 = vmatpush2.msra.mxu0 0.0
  %1226 = vmatprep.subr.mxu0 0.0
  %1227 = vmatpush2.msra.mxu0 0.0
  %1228 = vmatprep.subr.mxu0 0.0
  %1229 = vmatpush2.msra.mxu0 0.0
  %1230 = vmatprep.mubr.f32.mxu0 0.0
  %1231 = vmatmul.mubr.f32.gmra.mxu0 %v1161
  %v1232 = vpop.f32.mrf.mxu0
  %v1233 = vadd.f32 %v1158, %v1232
  %v1234 = vpop.f32.mrf.mxu0
  %1235 = vmatprep.mubr.f32.mxu0 0.0
  %1236 = vmatmul.mubr.f32.gmra.mxu0 %v1164
  %v1237 = vpop.f32.mrf.mxu0
  %v1238 = vadd.f32 %v1158, %v1237
  %v1239 = vpop.f32.mrf.mxu0
  %1240 = vdwg.mxu0
  %vm1241 = vcmp.gt.f32.partialorder %v1233, 0.0
  %vm1242 = vcmp.gt.f32.partialorder %v1238, 0.0
  %v1243 = vmul.f32 %v1233, 0.1
  %v1244 = vmul.f32 %v1238, 0.1
  %v1245 = vsel %vm1241, %v1233, %v1243
  %v1246 = vsel %vm1242, %v1238, %v1244
  %1247 = vmatprep.subr.mxu0 0.0
  %1248 = vmatpush1.msra.mxu0 0.0
  %1249 = vmatprep.subr.mxu0 0.0
  %1250 = vmatpush1.msra.mxu0 0.0
  %1251 = vmatprep.subr.mxu0 0.0
  %1252 = vmatpush1.msra.mxu0 0.0
  %1253 = vmatprep.subr.mxu0 0.0
  %1254 = vmatpush1.msra.mxu0 0.0
  %1255 = vmatprep.subr.mxu0 0.0
  %1256 = vmatpush1.msra.mxu0 0.0
  %1257 = vmatprep.subr.mxu0 0.0
  %1258 = vmatpush1.msra.mxu0 0.0
  %1259 = vmatprep.subr.mxu0 0.0
  %1260 = vmatpush1.msra.mxu0 0.0
  %1261 = vmatprep.subr.mxu0 0.0
  %1262 = vmatpush1.msra.mxu0 0.0
  %1263 = vmatprep.subr.mxu0 0.0
  %1264 = vmatpush1.msra.mxu0 0.0
  %1265 = vmatprep.subr.mxu0 0.0
  %1266 = vmatpush1.msra.mxu0 0.0
  %1267 = vmatprep.subr.mxu0 0.0
  %1268 = vmatpush1.msra.mxu0 0.0
  %1269 = vmatprep.subr.mxu0 0.0
  %1270 = vmatpush1.msra.mxu0 0.0
  %1271 = vmatprep.subr.mxu0 0.0
  %1272 = vmatpush1.msra.mxu0 0.0
  %1273 = vmatprep.subr.mxu0 0.0
  %1274 = vmatpush1.msra.mxu0 0.0
  %1275 = vmatprep.subr.mxu0 0.0
  %1276 = vmatpush1.msra.mxu0 %v1246
  %1277 = vmatprep.subr.mxu0 0.0
  %1278 = vmatpush1.msra.mxu0 %v1245
  %1279 = vmatprep.subr.mxu0 0.0
  %1280 = vmatpush2.msra.mxu0 0.0
  %1281 = vmatprep.subr.mxu0 0.0
  %1282 = vmatpush2.msra.mxu0 0.0
  %1283 = vmatprep.subr.mxu0 0.0
  %1284 = vmatpush2.msra.mxu0 0.0
  %1285 = vmatprep.subr.mxu0 0.0
  %1286 = vmatpush2.msra.mxu0 0.0
  %1287 = vmatprep.subr.mxu0 0.0
  %1288 = vmatpush2.msra.mxu0 0.0
  %1289 = vmatprep.subr.mxu0 0.0
  %1290 = vmatpush2.msra.mxu0 0.0
  %1291 = vmatprep.subr.mxu0 0.0
  %1292 = vmatpush2.msra.mxu0 0.0
  %1293 = vmatprep.subr.mxu0 0.0
  %1294 = vmatpush2.msra.mxu0 0.0
  %1295 = vmatprep.subr.mxu0 0.0
  %1296 = vmatpush2.msra.mxu0 0.0
  %1297 = vmatprep.subr.mxu0 0.0
  %1298 = vmatpush2.msra.mxu0 0.0
  %1299 = vmatprep.subr.mxu0 0.0
  %1300 = vmatpush2.msra.mxu0 0.0
  %1301 = vmatprep.subr.mxu0 0.0
  %1302 = vmatpush2.msra.mxu0 0.0
  %1303 = vmatprep.subr.mxu0 0.0
  %1304 = vmatpush2.msra.mxu0 0.0
  %1305 = vmatprep.subr.mxu0 0.0
  %1306 = vmatpush2.msra.mxu0 0.0
  %1307 = vmatprep.subr.mxu0 0.0
  %1308 = vmatpush2.msra.mxu0 0.0
  %1309 = vmatprep.subr.mxu0 0.0
  %1310 = vmatpush2.msra.mxu0 0.0
  %1311 = vmatprep.mubr.f32.mxu0 0.0
  %1312 = vmatmul.mubr.f32.gmra.mxu0 %v572
  %v1313 = vpop.f32.mrf.mxu0
  %v1314 = vadd.f32 %v813, %v1313
  %v1315 = vpop.f32.mrf.mxu0
  %1316 = vdwg.mxu0
  %s1317 = scalar_lea.vmem %s12, 32
  %v1318 = vld [vmem:[%s1317] sm:$0xff]
  %v1319 = vld [vmem:[%s1317 + $0x8] sm:$0xff]
  %v1320 = vld [vmem:[%s1317 + $0x10] sm:$0xff]
  %v1321 = vld [vmem:[%s1317 + $0x18] sm:$0xff]
  %s1322 = scalar_lea.vmem %s13, 1
  %v1323 = vld [vmem:[%s1322] sm:$0x1]
  %v1325 = vlaneseq
  %v1326 = vshrl.u32 %v1325, 7
  %v1327 = vsub.s32 0, %v1326
  %v1328 = vrot.slane %v1323, %v1327
  %v1331 = vsel %vm389, %v1314, 0
  %1333 = vmatprep.subr.mxu0 0.0
  %1334 = vmatpush1.msra.mxu0 0.0
  %1335 = vmatprep.subr.mxu0 0.0
  %1336 = vmatpush1.msra.mxu0 0.0
  %1337 = vmatprep.subr.mxu0 0.0
  %1338 = vmatpush1.msra.mxu0 0.0
  %1339 = vmatprep.subr.mxu0 0.0
  %1340 = vmatpush1.msra.mxu0 0.0
  %1341 = vmatprep.subr.mxu0 0.0
  %1342 = vmatpush1.msra.mxu0 0.0
  %1343 = vmatprep.subr.mxu0 0.0
  %1344 = vmatpush1.msra.mxu0 0.0
  %1345 = vmatprep.subr.mxu0 0.0
  %1346 = vmatpush1.msra.mxu0 0.0
  %1347 = vmatprep.subr.mxu0 0.0
  %1348 = vmatpush1.msra.mxu0 0.0
  %1349 = vmatprep.subr.mxu0 0.0
  %1350 = vmatpush1.msra.mxu0 0.0
  %1351 = vmatprep.subr.mxu0 0.0
  %1352 = vmatpush1.msra.mxu0 0.0
  %1353 = vmatprep.subr.mxu0 0.0
  %1354 = vmatpush1.msra.mxu0 0.0
  %1355 = vmatprep.subr.mxu0 0.0
  %1356 = vmatpush1.msra.mxu0 0.0
  %1357 = vmatprep.subr.mxu0 0.0
  %1358 = vmatpush1.msra.mxu0 %v1321
  %1359 = vmatprep.subr.mxu0 0.0
  %1360 = vmatpush1.msra.mxu0 %v1320
  %1361 = vmatprep.subr.mxu0 0.0
  %1362 = vmatpush1.msra.mxu0 %v1319
  %1363 = vmatprep.subr.mxu0 0.0
  %1364 = vmatpush1.msra.mxu0 %v1318
  %1365 = vmatprep.subr.mxu0 0.0
  %1366 = vmatpush2.msra.mxu0 0.0
  %1367 = vmatprep.subr.mxu0 0.0
  %1368 = vmatpush2.msra.mxu0 0.0
  %1369 = vmatprep.subr.mxu0 0.0
  %1370 = vmatpush2.msra.mxu0 0.0
  %1371 = vmatprep.subr.mxu0 0.0
  %1372 = vmatpush2.msra.mxu0 0.0
  %1373 = vmatprep.subr.mxu0 0.0
  %1374 = vmatpush2.msra.mxu0 0.0
  %1375 = vmatprep.subr.mxu0 0.0
  %1376 = vmatpush2.msra.mxu0 0.0
  %1377 = vmatprep.subr.mxu0 0.0
  %1378 = vmatpush2.msra.mxu0 0.0
  %1379 = vmatprep.subr.mxu0 0.0
  %1380 = vmatpush2.msra.mxu0 0.0
  %1381 = vmatprep.subr.mxu0 0.0
  %1382 = vmatpush2.msra.mxu0 0.0
  %1383 = vmatprep.subr.mxu0 0.0
  %1384 = vmatpush2.msra.mxu0 0.0
  %1385 = vmatprep.subr.mxu0 0.0
  %1386 = vmatpush2.msra.mxu0 0.0
  %1387 = vmatprep.subr.mxu0 0.0
  %1388 = vmatpush2.msra.mxu0 0.0
  %1389 = vmatprep.subr.mxu0 0.0
  %1390 = vmatpush2.msra.mxu0 0.0
  %1391 = vmatprep.subr.mxu0 0.0
  %1392 = vmatpush2.msra.mxu0 0.0
  %1393 = vmatprep.subr.mxu0 0.0
  %1394 = vmatpush2.msra.mxu0 0.0
  %1395 = vmatprep.subr.mxu0 0.0
  %1396 = vmatpush2.msra.mxu0 0.0
  %1397 = vmatprep.mubr.f32.mxu0 0.0
  %1398 = vmatmul.mubr.f32.gmra.mxu0 %v1331
  %v1399 = vpop.f32.mrf.mxu0
  %v1400 = vadd.f32 %v1328, %v1399
  %v1401 = vpop.f32.mrf.mxu0
  %1402 = vdwg.mxu0
  %v1403 = vmax.f32 %v1400, 0.0
  %s1404 = scalar_lea.vmem %s14, 32
  %v1405 = vld [vmem:[%s1404] sm:$0xff]
  %v1406 = vld [vmem:[%s1404 + $0x8] sm:$0xff]
  %v1407 = vld [vmem:[%s1404 + $0x10] sm:$0xff]
  %v1408 = vld [vmem:[%s1404 + $0x18] sm:$0xff]
  %s1409 = scalar_lea.vmem %s15, 1
  %v1410 = vld [vmem:[%s1409] sm:$0x1]
  %v1412 = vlaneseq
  %v1413 = vshrl.u32 %v1412, 7
  %v1414 = vsub.s32 0, %v1413
  %v1415 = vrot.slane %v1410, %v1414
  %v1418 = vsel %vm389, %v1403, 0
  %1420 = vmatprep.subr.mxu0 0.0
  %1421 = vmatpush1.msra.mxu0 0.0
  %1422 = vmatprep.subr.mxu0 0.0
  %1423 = vmatpush1.msra.mxu0 0.0
  %1424 = vmatprep.subr.mxu0 0.0
  %1425 = vmatpush1.msra.mxu0 0.0
  %1426 = vmatprep.subr.mxu0 0.0
  %1427 = vmatpush1.msra.mxu0 0.0
  %1428 = vmatprep.subr.mxu0 0.0
  %1429 = vmatpush1.msra.mxu0 0.0
  %1430 = vmatprep.subr.mxu0 0.0
  %1431 = vmatpush1.msra.mxu0 0.0
  %1432 = vmatprep.subr.mxu0 0.0
  %1433 = vmatpush1.msra.mxu0 0.0
  %1434 = vmatprep.subr.mxu0 0.0
  %1435 = vmatpush1.msra.mxu0 0.0
  %1436 = vmatprep.subr.mxu0 0.0
  %1437 = vmatpush1.msra.mxu0 0.0
  %1438 = vmatprep.subr.mxu0 0.0
  %1439 = vmatpush1.msra.mxu0 0.0
  %1440 = vmatprep.subr.mxu0 0.0
  %1441 = vmatpush1.msra.mxu0 0.0
  %1442 = vmatprep.subr.mxu0 0.0
  %1443 = vmatpush1.msra.mxu0 0.0
  %1444 = vmatprep.subr.mxu0 0.0
  %1445 = vmatpush1.msra.mxu0 %v1408
  %1446 = vmatprep.subr.mxu0 0.0
  %1447 = vmatpush1.msra.mxu0 %v1407
  %1448 = vmatprep.subr.mxu0 0.0
  %1449 = vmatpush1.msra.mxu0 %v1406
  %1450 = vmatprep.subr.mxu0 0.0
  %1451 = vmatpush1.msra.mxu0 %v1405
  %1452 = vmatprep.subr.mxu0 0.0
  %1453 = vmatpush2.msra.mxu0 0.0
  %1454 = vmatprep.subr.mxu0 0.0
  %1455 = vmatpush2.msra.mxu0 0.0
  %1456 = vmatprep.subr.mxu0 0.0
  %1457 = vmatpush2.msra.mxu0 0.0
  %1458 = vmatprep.subr.mxu0 0.0
  %1459 = vmatpush2.msra.mxu0 0.0
  %1460 = vmatprep.subr.mxu0 0.0
  %1461 = vmatpush2.msra.mxu0 0.0
  %1462 = vmatprep.subr.mxu0 0.0
  %1463 = vmatpush2.msra.mxu0 0.0
  %1464 = vmatprep.subr.mxu0 0.0
  %1465 = vmatpush2.msra.mxu0 0.0
  %1466 = vmatprep.subr.mxu0 0.0
  %1467 = vmatpush2.msra.mxu0 0.0
  %1468 = vmatprep.subr.mxu0 0.0
  %1469 = vmatpush2.msra.mxu0 0.0
  %1470 = vmatprep.subr.mxu0 0.0
  %1471 = vmatpush2.msra.mxu0 0.0
  %1472 = vmatprep.subr.mxu0 0.0
  %1473 = vmatpush2.msra.mxu0 0.0
  %1474 = vmatprep.subr.mxu0 0.0
  %1475 = vmatpush2.msra.mxu0 0.0
  %1476 = vmatprep.subr.mxu0 0.0
  %1477 = vmatpush2.msra.mxu0 0.0
  %1478 = vmatprep.subr.mxu0 0.0
  %1479 = vmatpush2.msra.mxu0 0.0
  %1480 = vmatprep.subr.mxu0 0.0
  %1481 = vmatpush2.msra.mxu0 0.0
  %1482 = vmatprep.subr.mxu0 0.0
  %1483 = vmatpush2.msra.mxu0 0.0
  %1484 = vmatprep.mubr.f32.mxu0 0.0
  %1485 = vmatmul.mubr.f32.gmra.mxu0 %v1418
  %v1486 = vpop.f32.mrf.mxu0
  %v1487 = vadd.f32 %v1415, %v1486
  %v1488 = vpop.f32.mrf.mxu0
  %1489 = vdwg.mxu0
  %v1490 = vmax.f32 %v1487, 0.0
  %1491 = vmatprep.subr.mxu0 0.0
  %1492 = vmatpush1.msra.mxu0 0.0
  %1493 = vmatprep.subr.mxu0 0.0
  %1494 = vmatpush1.msra.mxu0 0.0
  %1495 = vmatprep.subr.mxu0 0.0
  %1496 = vmatpush1.msra.mxu0 0.0
  %1497 = vmatprep.subr.mxu0 0.0
  %1498 = vmatpush1.msra.mxu0 0.0
  %1499 = vmatprep.subr.mxu0 0.0
  %1500 = vmatpush1.msra.mxu0 0.0
  %1501 = vmatprep.subr.mxu0 0.0
  %1502 = vmatpush1.msra.mxu0 0.0
  %1503 = vmatprep.subr.mxu0 0.0
  %1504 = vmatpush1.msra.mxu0 0.0
  %1505 = vmatprep.subr.mxu0 0.0
  %1506 = vmatpush1.msra.mxu0 0.0
  %1507 = vmatprep.subr.mxu0 0.0
  %1508 = vmatpush1.msra.mxu0 0.0
  %1509 = vmatprep.subr.mxu0 0.0
  %1510 = vmatpush1.msra.mxu0 0.0
  %1511 = vmatprep.subr.mxu0 0.0
  %1512 = vmatpush1.msra.mxu0 0.0
  %1513 = vmatprep.subr.mxu0 0.0
  %1514 = vmatpush1.msra.mxu0 0.0
  %1515 = vmatprep.subr.mxu0 0.0
  %1516 = vmatpush1.msra.mxu0 0.0
  %1517 = vmatprep.subr.mxu0 0.0
  %1518 = vmatpush1.msra.mxu0 0.0
  %1519 = vmatprep.subr.mxu0 0.0
  %1520 = vmatpush1.msra.mxu0 0.0
  %1521 = vmatprep.subr.mxu0 0.0
  %1522 = vmatpush1.msra.mxu0 %v1490
  %1523 = vmatprep.subr.mxu0 0.0
  %1524 = vmatpush2.msra.mxu0 0.0
  %1525 = vmatprep.subr.mxu0 0.0
  %1526 = vmatpush2.msra.mxu0 0.0
  %1527 = vmatprep.subr.mxu0 0.0
  %1528 = vmatpush2.msra.mxu0 0.0
  %1529 = vmatprep.subr.mxu0 0.0
  %1530 = vmatpush2.msra.mxu0 0.0
  %1531 = vmatprep.subr.mxu0 0.0
  %1532 = vmatpush2.msra.mxu0 0.0
  %1533 = vmatprep.subr.mxu0 0.0
  %1534 = vmatpush2.msra.mxu0 0.0
  %1535 = vmatprep.subr.mxu0 0.0
  %1536 = vmatpush2.msra.mxu0 0.0
  %1537 = vmatprep.subr.mxu0 0.0
  %1538 = vmatpush2.msra.mxu0 0.0
  %1539 = vmatprep.subr.mxu0 0.0
  %1540 = vmatpush2.msra.mxu0 0.0
  %1541 = vmatprep.subr.mxu0 0.0
  %1542 = vmatpush2.msra.mxu0 0.0
  %1543 = vmatprep.subr.mxu0 0.0
  %1544 = vmatpush2.msra.mxu0 0.0
  %1545 = vmatprep.subr.mxu0 0.0
  %1546 = vmatpush2.msra.mxu0 0.0
  %1547 = vmatprep.subr.mxu0 0.0
  %1548 = vmatpush2.msra.mxu0 0.0
  %1549 = vmatprep.subr.mxu0 0.0
  %1550 = vmatpush2.msra.mxu0 0.0
  %1551 = vmatprep.subr.mxu0 0.0
  %1552 = vmatpush2.msra.mxu0 0.0
  %1553 = vmatprep.subr.mxu0 0.0
  %1554 = vmatpush2.msra.mxu0 0.0
  %1555 = vmatprep.mubr.f32.mxu0 0.0
  %1556 = vmatmul.mubr.f32.gmra.mxu0 %v79
  %v1557 = vpop.f32.mrf.mxu0
  %v1558 = vadd.f32 0.0, %v1557
  %v1559 = vpop.f32.mrf.mxu0
  %1560 = vmatprep.mubr.f32.mxu0 0.0
  %1561 = vmatmul.mubr.f32.gmra.mxu0 %v82
  %v1562 = vpop.f32.mrf.mxu0
  %v1563 = vadd.f32 0.0, %v1562
  %v1564 = vpop.f32.mrf.mxu0
  %1565 = vdwg.mxu0
  %v1566 = vadd.f32 %v1245, %v1558
  %v1567 = vadd.f32 %v1246, %v1563
  %1568 = vmatprep.subr.mxu0 0.0
  %1569 = vmatpush1.msra.mxu0 0.0
  %1570 = vmatprep.subr.mxu0 0.0
  %1571 = vmatpush1.msra.mxu0 0.0
  %1572 = vmatprep.subr.mxu0 0.0
  %1573 = vmatpush1.msra.mxu0 0.0
  %1574 = vmatprep.subr.mxu0 0.0
  %1575 = vmatpush1.msra.mxu0 0.0
  %1576 = vmatprep.subr.mxu0 0.0
  %1577 = vmatpush1.msra.mxu0 0.0
  %1578 = vmatprep.subr.mxu0 0.0
  %1579 = vmatpush1.msra.mxu0 0.0
  %1580 = vmatprep.subr.mxu0 0.0
  %1581 = vmatpush1.msra.mxu0 0.0
  %1582 = vmatprep.subr.mxu0 0.0
  %1583 = vmatpush1.msra.mxu0 0.0
  %1584 = vmatprep.subr.mxu0 0.0
  %1585 = vmatpush1.msra.mxu0 0.0
  %1586 = vmatprep.subr.mxu0 0.0
  %1587 = vmatpush1.msra.mxu0 0.0
  %1588 = vmatprep.subr.mxu0 0.0
  %1589 = vmatpush1.msra.mxu0 0.0
  %1590 = vmatprep.subr.mxu0 0.0
  %1591 = vmatpush1.msra.mxu0 0.0
  %1592 = vmatprep.subr.mxu0 0.0
  %1593 = vmatpush1.msra.mxu0 0.0
  %1594 = vmatprep.subr.mxu0 0.0
  %1595 = vmatpush1.msra.mxu0 0.0
  %1596 = vmatprep.subr.mxu0 0.0
  %1597 = vmatpush1.msra.mxu0 %v1567
  %1598 = vmatprep.subr.mxu0 0.0
  %1599 = vmatpush1.msra.mxu0 %v1566
  %1600 = vmatprep.subr.mxu0 0.0
  %1601 = vmatpush2.msra.mxu0 0.0
  %1602 = vmatprep.subr.mxu0 0.0
  %1603 = vmatpush2.msra.mxu0 0.0
  %1604 = vmatprep.subr.mxu0 0.0
  %1605 = vmatpush2.msra.mxu0 0.0
  %1606 = vmatprep.subr.mxu0 0.0
  %1607 = vmatpush2.msra.mxu0 0.0
  %1608 = vmatprep.subr.mxu0 0.0
  %1609 = vmatpush2.msra.mxu0 0.0
  %1610 = vmatprep.subr.mxu0 0.0
  %1611 = vmatpush2.msra.mxu0 0.0
  %1612 = vmatprep.subr.mxu0 0.0
  %1613 = vmatpush2.msra.mxu0 0.0
  %1614 = vmatprep.subr.mxu0 0.0
  %1615 = vmatpush2.msra.mxu0 0.0
  %1616 = vmatprep.subr.mxu0 0.0
  %1617 = vmatpush2.msra.mxu0 0.0
  %1618 = vmatprep.subr.mxu0 0.0
  %1619 = vmatpush2.msra.mxu0 0.0
  %1620 = vmatprep.subr.mxu0 0.0
  %1621 = vmatpush2.msra.mxu0 0.0
  %1622 = vmatprep.subr.mxu0 0.0
  %1623 = vmatpush2.msra.mxu0 0.0
  %1624 = vmatprep.subr.mxu0 0.0
  %1625 = vmatpush2.msra.mxu0 0.0
  %1626 = vmatprep.subr.mxu0 0.0
  %1627 = vmatpush2.msra.mxu0 0.0
  %1628 = vmatprep.subr.mxu0 0.0
  %1629 = vmatpush2.msra.mxu0 0.0
  %1630 = vmatprep.subr.mxu0 0.0
  %1631 = vmatpush2.msra.mxu0 0.0
  %1632 = vmatprep.mubr.f32.mxu0 0.0
  %1633 = vmatmul.mubr.f32.gmra.mxu0 %v190
  %v1634 = vpop.f32.mrf.mxu0
  %v1635 = vadd.f32 %v185, %v1634
  %v1636 = vpop.f32.mrf.mxu0
  %1637 = vmatprep.mubr.f32.mxu0 0.0
  %1638 = vmatmul.mubr.f32.gmra.mxu0 %v193
  %v1639 = vpop.f32.mrf.mxu0
  %v1640 = vadd.f32 %v186, %v1639
  %v1641 = vpop.f32.mrf.mxu0
  %1642 = vmatprep.mubr.f32.mxu0 0.0
  %1643 = vmatmul.mubr.f32.gmra.mxu0 %v196
  %v1644 = vpop.f32.mrf.mxu0
  %v1645 = vadd.f32 %v187, %v1644
  %v1646 = vpop.f32.mrf.mxu0
  %1647 = vdwg.mxu0
  %v1648 = vmax.f32 %v1635, 0.0
  %v1649 = vmax.f32 %v1640, 0.0
  %v1650 = vmax.f32 %v1645, 0.0
  %1651 = vmatprep.subr.mxu0 0.0
  %1652 = vmatpush1.msra.mxu0 0.0
  %1653 = vmatprep.subr.mxu0 0.0
  %1654 = vmatpush1.msra.mxu0 0.0
  %1655 = vmatprep.subr.mxu0 0.0
  %1656 = vmatpush1.msra.mxu0 0.0
  %1657 = vmatprep.subr.mxu0 0.0
  %1658 = vmatpush1.msra.mxu0 0.0
  %1659 = vmatprep.subr.mxu0 0.0
  %1660 = vmatpush1.msra.mxu0 0.0
  %1661 = vmatprep.subr.mxu0 0.0
  %1662 = vmatpush1.msra.mxu0 0.0
  %1663 = vmatprep.subr.mxu0 0.0
  %1664 = vmatpush1.msra.mxu0 0.0
  %1665 = vmatprep.subr.mxu0 0.0
  %1666 = vmatpush1.msra.mxu0 0.0
  %1667 = vmatprep.subr.mxu0 0.0
  %1668 = vmatpush1.msra.mxu0 0.0
  %1669 = vmatprep.subr.mxu0 0.0
  %1670 = vmatpush1.msra.mxu0 0.0
  %1671 = vmatprep.subr.mxu0 0.0
  %1672 = vmatpush1.msra.mxu0 0.0
  %1673 = vmatprep.subr.mxu0 0.0
  %1674 = vmatpush1.msra.mxu0 0.0
  %1675 = vmatprep.subr.mxu0 0.0
  %1676 = vmatpush1.msra.mxu0 0.0
  %1677 = vmatprep.subr.mxu0 0.0
  %1678 = vmatpush1.msra.mxu0 %v1650
  %1679 = vmatprep.subr.mxu0 0.0
  %1680 = vmatpush1.msra.mxu0 %v1649
  %1681 = vmatprep.subr.mxu0 0.0
  %1682 = vmatpush1.msra.mxu0 %v1648
  %1683 = vmatprep.subr.mxu0 0.0
  %1684 = vmatpush2.msra.mxu0 0.0
  %1685 = vmatprep.subr.mxu0 0.0
  %1686 = vmatpush2.msra.mxu0 0.0
  %1687 = vmatprep.subr.mxu0 0.0
  %1688 = vmatpush2.msra.mxu0 0.0
  %1689 = vmatprep.subr.mxu0 0.0
  %1690 = vmatpush2.msra.mxu0 0.0
  %1691 = vmatprep.subr.mxu0 0.0
  %1692 = vmatpush2.msra.mxu0 0.0
  %1693 = vmatprep.subr.mxu0 0.0
  %1694 = vmatpush2.msra.mxu0 0.0
  %1695 = vmatprep.subr.mxu0 0.0
  %1696 = vmatpush2.msra.mxu0 0.0
  %1697 = vmatprep.subr.mxu0 0.0
  %1698 = vmatpush2.msra.mxu0 0.0
  %1699 = vmatprep.subr.mxu0 0.0
  %1700 = vmatpush2.msra.mxu0 0.0
  %1701 = vmatprep.subr.mxu0 0.0
  %1702 = vmatpush2.msra.mxu0 0.0
  %1703 = vmatprep.subr.mxu0 0.0
  %1704 = vmatpush2.msra.mxu0 0.0
  %1705 = vmatprep.subr.mxu0 0.0
  %1706 = vmatpush2.msra.mxu0 0.0
  %1707 = vmatprep.subr.mxu0 0.0
  %1708 = vmatpush2.msra.mxu0 0.0
  %1709 = vmatprep.subr.mxu0 0.0
  %1710 = vmatpush2.msra.mxu0 0.0
  %1711 = vmatprep.subr.mxu0 0.0
  %1712 = vmatpush2.msra.mxu0 0.0
  %1713 = vmatprep.subr.mxu0 0.0
  %1714 = vmatpush2.msra.mxu0 0.0
  %1715 = vmatprep.mubr.f32.mxu0 0.0
  %1716 = vmatmul.mubr.f32.gmra.mxu0 %v296
  %v1717 = vpop.f32.mrf.mxu0
  %v1718 = vadd.f32 0.0, %v1717
  %v1719 = vpop.f32.mrf.mxu0
  %1720 = vmatprep.mubr.f32.mxu0 0.0
  %1721 = vmatmul.mubr.f32.gmra.mxu0 %v299
  %v1722 = vpop.f32.mrf.mxu0
  %v1723 = vadd.f32 0.0, %v1722
  %v1724 = vpop.f32.mrf.mxu0
  %1725 = vdwg.mxu0
  %v1726 = vadd.f32 %v1566, %v1718
  %v1727 = vadd.f32 %v1567, %v1723
  %s1728 = scalar_lea.vmem %s8, 64
  %v1729 = vld [vmem:[%s1728] sm:$0xff]
  %v1730 = vld [vmem:[%s1728 + $0x8] sm:$0xff]
  %v1731 = vld [vmem:[%s1728 + $0x10] sm:$0xff]
  %v1732 = vld [vmem:[%s1728 + $0x18] sm:$0xff]
  %s1733 = scalar_lea.vmem %s9, 2
  %v1734 = vld [vmem:[%s1733] sm:$0x1]
  %v1736 = vlaneseq
  %v1737 = vshrl.u32 %v1736, 7
  %v1738 = vsub.s32 0, %v1737
  %v1739 = vrot.slane %v1734, %v1738
  %v1742 = vsel %vm389, %v1726, 0
  %v1745 = vsel %vm389, %v1727, 0
  %1747 = vmatprep.subr.mxu0 0.0
  %1748 = vmatpush1.msra.mxu0 0.0
  %1749 = vmatprep.subr.mxu0 0.0
  %1750 = vmatpush1.msra.mxu0 0.0
  %1751 = vmatprep.subr.mxu0 0.0
  %1752 = vmatpush1.msra.mxu0 0.0
  %1753 = vmatprep.subr.mxu0 0.0
  %1754 = vmatpush1.msra.mxu0 0.0
  %1755 = vmatprep.subr.mxu0 0.0
  %1756 = vmatpush1.msra.mxu0 0.0
  %1757 = vmatprep.subr.mxu0 0.0
  %1758 = vmatpush1.msra.mxu0 0.0
  %1759 = vmatprep.subr.mxu0 0.0
  %1760 = vmatpush1.msra.mxu0 0.0
  %1761 = vmatprep.subr.mxu0 0.0
  %1762 = vmatpush1.msra.mxu0 0.0
  %1763 = vmatprep.subr.mxu0 0.0
  %1764 = vmatpush1.msra.mxu0 0.0
  %1765 = vmatprep.subr.mxu0 0.0
  %1766 = vmatpush1.msra.mxu0 0.0
  %1767 = vmatprep.subr.mxu0 0.0
  %1768 = vmatpush1.msra.mxu0 0.0
  %1769 = vmatprep.subr.mxu0 0.0
  %1770 = vmatpush1.msra.mxu0 0.0
  %1771 = vmatprep.subr.mxu0 0.0
  %1772 = vmatpush1.msra.mxu0 %v1732
  %1773 = vmatprep.subr.mxu0 0.0
  %1774 = vmatpush1.msra.mxu0 %v1731
  %1775 = vmatprep.subr.mxu0 0.0
  %1776 = vmatpush1.msra.mxu0 %v1730
  %1777 = vmatprep.subr.mxu0 0.0
  %1778 = vmatpush1.msra.mxu0 %v1729
  %1779 = vmatprep.subr.mxu0 0.0
  %1780 = vmatpush2.msra.mxu0 0.0
  %1781 = vmatprep.subr.mxu0 0.0
  %1782 = vmatpush2.msra.mxu0 0.0
  %1783 = vmatprep.subr.mxu0 0.0
  %1784 = vmatpush2.msra.mxu0 0.0
  %1785 = vmatprep.subr.mxu0 0.0
  %1786 = vmatpush2.msra.mxu0 0.0
  %1787 = vmatprep.subr.mxu0 0.0
  %1788 = vmatpush2.msra.mxu0 0.0
  %1789 = vmatprep.subr.mxu0 0.0
  %1790 = vmatpush2.msra.mxu0 0.0
  %1791 = vmatprep.subr.mxu0 0.0
  %1792 = vmatpush2.msra.mxu0 0.0
  %1793 = vmatprep.subr.mxu0 0.0
  %1794 = vmatpush2.msra.mxu0 0.0
  %1795 = vmatprep.subr.mxu0 0.0
  %1796 = vmatpush2.msra.mxu0 0.0
  %1797 = vmatprep.subr.mxu0 0.0
  %1798 = vmatpush2.msra.mxu0 0.0
  %1799 = vmatprep.subr.mxu0 0.0
  %1800 = vmatpush2.msra.mxu0 0.0
  %1801 = vmatprep.subr.mxu0 0.0
  %1802 = vmatpush2.msra.mxu0 0.0
  %1803 = vmatprep.subr.mxu0 0.0
  %1804 = vmatpush2.msra.mxu0 0.0
  %1805 = vmatprep.subr.mxu0 0.0
  %1806 = vmatpush2.msra.mxu0 0.0
  %1807 = vmatprep.subr.mxu0 0.0
  %1808 = vmatpush2.msra.mxu0 0.0
  %1809 = vmatprep.subr.mxu0 0.0
  %1810 = vmatpush2.msra.mxu0 0.0
  %1811 = vmatprep.mubr.f32.mxu0 0.0
  %1812 = vmatmul.mubr.f32.gmra.mxu0 %v1742
  %v1813 = vpop.f32.mrf.mxu0
  %v1814 = vadd.f32 %v1739, %v1813
  %v1815 = vpop.f32.mrf.mxu0
  %1816 = vmatprep.mubr.f32.mxu0 0.0
  %1817 = vmatmul.mubr.f32.gmra.mxu0 %v1745
  %v1818 = vpop.f32.mrf.mxu0
  %v1819 = vadd.f32 %v1739, %v1818
  %v1820 = vpop.f32.mrf.mxu0
  %1821 = vdwg.mxu0
  %v1822 = vmax.f32 %v1814, 0.0
  %v1823 = vmax.f32 %v1819, 0.0
  %s1824 = scalar_lea.vmem %s10, 64
  %v1825 = vld [vmem:[%s1824] sm:$0xff]
  %v1826 = vld [vmem:[%s1824 + $0x8] sm:$0xff]
  %v1827 = vld [vmem:[%s1824 + $0x10] sm:$0xff]
  %v1828 = vld [vmem:[%s1824 + $0x18] sm:$0xff]
  %s1829 = scalar_lea.vmem %s11, 2
  %v1830 = vld [vmem:[%s1829] sm:$0x1]
  %v1832 = vlaneseq
  %v1833 = vshrl.u32 %v1832, 7
  %v1834 = vsub.s32 0, %v1833
  %v1835 = vrot.slane %v1830, %v1834
  %v1838 = vsel %vm389, %v1822, 0
  %v1841 = vsel %vm389, %v1823, 0
  %1843 = vmatprep.subr.mxu0 0.0
  %1844 = vmatpush1.msra.mxu0 0.0
  %1845 = vmatprep.subr.mxu0 0.0
  %1846 = vmatpush1.msra.mxu0 0.0
  %1847 = vmatprep.subr.mxu0 0.0
  %1848 = vmatpush1.msra.mxu0 0.0
  %1849 = vmatprep.subr.mxu0 0.0
  %1850 = vmatpush1.msra.mxu0 0.0
  %1851 = vmatprep.subr.mxu0 0.0
  %1852 = vmatpush1.msra.mxu0 0.0
  %1853 = vmatprep.subr.mxu0 0.0
  %1854 = vmatpush1.msra.mxu0 0.0
  %1855 = vmatprep.subr.mxu0 0.0
  %1856 = vmatpush1.msra.mxu0 0.0
  %1857 = vmatprep.subr.mxu0 0.0
  %1858 = vmatpush1.msra.mxu0 0.0
  %1859 = vmatprep.subr.mxu0 0.0
  %1860 = vmatpush1.msra.mxu0 0.0
  %1861 = vmatprep.subr.mxu0 0.0
  %1862 = vmatpush1.msra.mxu0 0.0
  %1863 = vmatprep.subr.mxu0 0.0
  %1864 = vmatpush1.msra.mxu0 0.0
  %1865 = vmatprep.subr.mxu0 0.0
  %1866 = vmatpush1.msra.mxu0 0.0
  %1867 = vmatprep.subr.mxu0 0.0
  %1868 = vmatpush1.msra.mxu0 %v1828
  %1869 = vmatprep.subr.mxu0 0.0
  %1870 = vmatpush1.msra.mxu0 %v1827
  %1871 = vmatprep.subr.mxu0 0.0
  %1872 = vmatpush1.msra.mxu0 %v1826
  %1873 = vmatprep.subr.mxu0 0.0
  %1874 = vmatpush1.msra.mxu0 %v1825
  %1875 = vmatprep.subr.mxu0 0.0
  %1876 = vmatpush2.msra.mxu0 0.0
  %1877 = vmatprep.subr.mxu0 0.0
  %1878 = vmatpush2.msra.mxu0 0.0
  %1879 = vmatprep.subr.mxu0 0.0
  %1880 = vmatpush2.msra.mxu0 0.0
  %1881 = vmatprep.subr.mxu0 0.0
  %1882 = vmatpush2.msra.mxu0 0.0
  %1883 = vmatprep.subr.mxu0 0.0
  %1884 = vmatpush2.msra.mxu0 0.0
  %1885 = vmatprep.subr.mxu0 0.0
  %1886 = vmatpush2.msra.mxu0 0.0
  %1887 = vmatprep.subr.mxu0 0.0
  %1888 = vmatpush2.msra.mxu0 0.0
  %1889 = vmatprep.subr.mxu0 0.0
  %1890 = vmatpush2.msra.mxu0 0.0
  %1891 = vmatprep.subr.mxu0 0.0
  %1892 = vmatpush2.msra.mxu0 0.0
  %1893 = vmatprep.subr.mxu0 0.0
  %1894 = vmatpush2.msra.mxu0 0.0
  %1895 = vmatprep.subr.mxu0 0.0
  %1896 = vmatpush2.msra.mxu0 0.0
  %1897 = vmatprep.subr.mxu0 0.0
  %1898 = vmatpush2.msra.mxu0 0.0
  %1899 = vmatprep.subr.mxu0 0.0
  %1900 = vmatpush2.msra.mxu0 0.0
  %1901 = vmatprep.subr.mxu0 0.0
  %1902 = vmatpush2.msra.mxu0 0.0
  %1903 = vmatprep.subr.mxu0 0.0
  %1904 = vmatpush2.msra.mxu0 0.0
  %1905 = vmatprep.subr.mxu0 0.0
  %1906 = vmatpush2.msra.mxu0 0.0
  %1907 = vmatprep.mubr.f32.mxu0 0.0
  %1908 = vmatmul.mubr.f32.gmra.mxu0 %v1838
  %v1909 = vpop.f32.mrf.mxu0
  %v1910 = vadd.f32 %v1835, %v1909
  %v1911 = vpop.f32.mrf.mxu0
  %1912 = vmatprep.mubr.f32.mxu0 0.0
  %1913 = vmatmul.mubr.f32.gmra.mxu0 %v1841
  %v1914 = vpop.f32.mrf.mxu0
  %v1915 = vadd.f32 %v1835, %v1914
  %v1916 = vpop.f32.mrf.mxu0
  %1917 = vdwg.mxu0
  %vm1918 = vcmp.gt.f32.partialorder %v1910, 0.0
  %vm1919 = vcmp.gt.f32.partialorder %v1915, 0.0
  %v1920 = vmul.f32 %v1910, 0.1
  %v1921 = vmul.f32 %v1915, 0.1
  %v1922 = vsel %vm1918, %v1910, %v1920
  %v1923 = vsel %vm1919, %v1915, %v1921
  %1924 = vmatprep.subr.mxu0 0.0
  %1925 = vmatpush1.msra.mxu0 0.0
  %1926 = vmatprep.subr.mxu0 0.0
  %1927 = vmatpush1.msra.mxu0 0.0
  %1928 = vmatprep.subr.mxu0 0.0
  %1929 = vmatpush1.msra.mxu0 0.0
  %1930 = vmatprep.subr.mxu0 0.0
  %1931 = vmatpush1.msra.mxu0 0.0
  %1932 = vmatprep.subr.mxu0 0.0
  %1933 = vmatpush1.msra.mxu0 0.0
  %1934 = vmatprep.subr.mxu0 0.0
  %1935 = vmatpush1.msra.mxu0 0.0
  %1936 = vmatprep.subr.mxu0 0.0
  %1937 = vmatpush1.msra.mxu0 0.0
  %1938 = vmatprep.subr.mxu0 0.0
  %1939 = vmatpush1.msra.mxu0 0.0
  %1940 = vmatprep.subr.mxu0 0.0
  %1941 = vmatpush1.msra.mxu0 0.0
  %1942 = vmatprep.subr.mxu0 0.0
  %1943 = vmatpush1.msra.mxu0 0.0
  %1944 = vmatprep.subr.mxu0 0.0
  %1945 = vmatpush1.msra.mxu0 0.0
  %1946 = vmatprep.subr.mxu0 0.0
  %1947 = vmatpush1.msra.mxu0 0.0
  %1948 = vmatprep.subr.mxu0 0.0
  %1949 = vmatpush1.msra.mxu0 0.0
  %1950 = vmatprep.subr.mxu0 0.0
  %1951 = vmatpush1.msra.mxu0 0.0
  %1952 = vmatprep.subr.mxu0 0.0
  %1953 = vmatpush1.msra.mxu0 %v1923
  %1954 = vmatprep.subr.mxu0 0.0
  %1955 = vmatpush1.msra.mxu0 %v1922
  %1956 = vmatprep.subr.mxu0 0.0
  %1957 = vmatpush2.msra.mxu0 0.0
  %1958 = vmatprep.subr.mxu0 0.0
  %1959 = vmatpush2.msra.mxu0 0.0
  %1960 = vmatprep.subr.mxu0 0.0
  %1961 = vmatpush2.msra.mxu0 0.0
  %1962 = vmatprep.subr.mxu0 0.0
  %1963 = vmatpush2.msra.mxu0 0.0
  %1964 = vmatprep.subr.mxu0 0.0
  %1965 = vmatpush2.msra.mxu0 0.0
  %1966 = vmatprep.subr.mxu0 0.0
  %1967 = vmatpush2.msra.mxu0 0.0
  %1968 = vmatprep.subr.mxu0 0.0
  %1969 = vmatpush2.msra.mxu0 0.0
  %1970 = vmatprep.subr.mxu0 0.0
  %1971 = vmatpush2.msra.mxu0 0.0
  %1972 = vmatprep.subr.mxu0 0.0
  %1973 = vmatpush2.msra.mxu0 0.0
  %1974 = vmatprep.subr.mxu0 0.0
  %1975 = vmatpush2.msra.mxu0 0.0
  %1976 = vmatprep.subr.mxu0 0.0
  %1977 = vmatpush2.msra.mxu0 0.0
  %1978 = vmatprep.subr.mxu0 0.0
  %1979 = vmatpush2.msra.mxu0 0.0
  %1980 = vmatprep.subr.mxu0 0.0
  %1981 = vmatpush2.msra.mxu0 0.0
  %1982 = vmatprep.subr.mxu0 0.0
  %1983 = vmatpush2.msra.mxu0 0.0
  %1984 = vmatprep.subr.mxu0 0.0
  %1985 = vmatpush2.msra.mxu0 0.0
  %1986 = vmatprep.subr.mxu0 0.0
  %1987 = vmatpush2.msra.mxu0 0.0
  %1988 = vmatprep.mubr.f32.mxu0 0.0
  %1989 = vmatmul.mubr.f32.gmra.mxu0 %v572
  %v1990 = vpop.f32.mrf.mxu0
  %v1991 = vadd.f32 0.0, %v1990
  %v1992 = vpop.f32.mrf.mxu0
  %1993 = vdwg.mxu0
  %v1994 = vld [vmem:[%s7] sm:$0xff]
  %1996 = vset.pattern.permute.xlu0 0
  %1997 = vperm.xlu0 %1996, %v1994
  %v1998 = vpop.permute.xlu0 %1997
  %v2000 = vmul.f32 %v1991, %v1998
  %v2001 = vld [vmem:[%s16] sm:$0xff]
  %v2002 = vld [vmem:[%s16 + $0x8] sm:$0xff]
  %v2003 = vld [vmem:[%s16 + $0x10] sm:$0xff]
  %v2004 = vld [vmem:[%s16 + $0x18] sm:$0xff]
  %v2005 = vld [vmem:[%s17] sm:$0x1]
  %v2007 = vlaneseq
  %v2008 = vshrl.u32 %v2007, 7
  %v2009 = vsub.s32 0, %v2008
  %v2010 = vrot.slane %v2005, %v2009
  %v2013 = vsel %vm389, %v2000, 0
  %2015 = vmatprep.subr.mxu0 0.0
  %2016 = vmatpush1.msra.mxu0 0.0
  %2017 = vmatprep.subr.mxu0 0.0
  %2018 = vmatpush1.msra.mxu0 0.0
  %2019 = vmatprep.subr.mxu0 0.0
  %2020 = vmatpush1.msra.mxu0 0.0
  %2021 = vmatprep.subr.mxu0 0.0
  %2022 = vmatpush1.msra.mxu0 0.0
  %2023 = vmatprep.subr.mxu0 0.0
  %2024 = vmatpush1.msra.mxu0 0.0
  %2025 = vmatprep.subr.mxu0 0.0
  %2026 = vmatpush1.msra.mxu0 0.0
  %2027 = vmatprep.subr.mxu0 0.0
  %2028 = vmatpush1.msra.mxu0 0.0
  %2029 = vmatprep.subr.mxu0 0.0
  %2030 = vmatpush1.msra.mxu0 0.0
  %2031 = vmatprep.subr.mxu0 0.0
  %2032 = vmatpush1.msra.mxu0 0.0
  %2033 = vmatprep.subr.mxu0 0.0
  %2034 = vmatpush1.msra.mxu0 0.0
  %2035 = vmatprep.subr.mxu0 0.0
  %2036 = vmatpush1.msra.mxu0 0.0
  %2037 = vmatprep.subr.mxu0 0.0
  %2038 = vmatpush1.msra.mxu0 0.0
  %2039 = vmatprep.subr.mxu0 0.0
  %2040 = vmatpush1.msra.mxu0 %v2004
  %2041 = vmatprep.subr.mxu0 0.0
  %2042 = vmatpush1.msra.mxu0 %v2003
  %2043 = vmatprep.subr.mxu0 0.0
  %2044 = vmatpush1.msra.mxu0 %v2002
  %2045 = vmatprep.subr.mxu0 0.0
  %2046 = vmatpush1.msra.mxu0 %v2001
  %2047 = vmatprep.subr.mxu0 0.0
  %2048 = vmatpush2.msra.mxu0 0.0
  %2049 = vmatprep.subr.mxu0 0.0
  %2050 = vmatpush2.msra.mxu0 0.0
  %2051 = vmatprep.subr.mxu0 0.0
  %2052 = vmatpush2.msra.mxu0 0.0
  %2053 = vmatprep.subr.mxu0 0.0
  %2054 = vmatpush2.msra.mxu0 0.0
  %2055 = vmatprep.subr.mxu0 0.0
  %2056 = vmatpush2.msra.mxu0 0.0
  %2057 = vmatprep.subr.mxu0 0.0
  %2058 = vmatpush2.msra.mxu0 0.0
  %2059 = vmatprep.subr.mxu0 0.0
  %2060 = vmatpush2.msra.mxu0 0.0
  %2061 = vmatprep.subr.mxu0 0.0
  %2062 = vmatpush2.msra.mxu0 0.0
  %2063 = vmatprep.subr.mxu0 0.0
  %2064 = vmatpush2.msra.mxu0 0.0
  %2065 = vmatprep.subr.mxu0 0.0
  %2066 = vmatpush2.msra.mxu0 0.0
  %2067 = vmatprep.subr.mxu0 0.0
  %2068 = vmatpush2.msra.mxu0 0.0
  %2069 = vmatprep.subr.mxu0 0.0
  %2070 = vmatpush2.msra.mxu0 0.0
  %2071 = vmatprep.subr.mxu0 0.0
  %2072 = vmatpush2.msra.mxu0 0.0
  %2073 = vmatprep.subr.mxu0 0.0
  %2074 = vmatpush2.msra.mxu0 0.0
  %2075 = vmatprep.subr.mxu0 0.0
  %2076 = vmatpush2.msra.mxu0 0.0
  %2077 = vmatprep.subr.mxu0 0.0
  %2078 = vmatpush2.msra.mxu0 0.0
  %2079 = vmatprep.mubr.f32.mxu0 0.0
  %2080 = vmatmul.mubr.f32.gmra.mxu0 %v2013
  %v2081 = vpop.f32.mrf.mxu0
  %v2082 = vadd.f32 %v2010, %v2081
  %v2083 = vpop.f32.mrf.mxu0
  %2084 = vdwg.mxu0
  %v2085 = vmax.f32 %v2082, 0.0
  %v2086 = vld [vmem:[%s18] sm:$0xff]
  %v2087 = vld [vmem:[%s18 + $0x8] sm:$0xff]
  %v2088 = vld [vmem:[%s19] sm:$0x1]
  %v2090 = vlaneseq
  %v2091 = vshrl.u32 %v2090, 7
  %v2092 = vsub.s32 0, %v2091
  %v2093 = vrot.slane %v2088, %v2092
  %v2096 = vsel %vm188, %v2085, 0
  %2098 = vmatprep.subr.mxu0 0.0
  %2099 = vmatpush1.msra.mxu0 0.0
  %2100 = vmatprep.subr.mxu0 0.0
  %2101 = vmatpush1.msra.mxu0 0.0
  %2102 = vmatprep.subr.mxu0 0.0
  %2103 = vmatpush1.msra.mxu0 0.0
  %2104 = vmatprep.subr.mxu0 0.0
  %2105 = vmatpush1.msra.mxu0 0.0
  %2106 = vmatprep.subr.mxu0 0.0
  %2107 = vmatpush1.msra.mxu0 0.0
  %2108 = vmatprep.subr.mxu0 0.0
  %2109 = vmatpush1.msra.mxu0 0.0
  %2110 = vmatprep.subr.mxu0 0.0
  %2111 = vmatpush1.msra.mxu0 0.0
  %2112 = vmatprep.subr.mxu0 0.0
  %2113 = vmatpush1.msra.mxu0 0.0
  %2114 = vmatprep.subr.mxu0 0.0
  %2115 = vmatpush1.msra.mxu0 0.0
  %2116 = vmatprep.subr.mxu0 0.0
  %2117 = vmatpush1.msra.mxu0 0.0
  %2118 = vmatprep.subr.mxu0 0.0
  %2119 = vmatpush1.msra.mxu0 0.0
  %2120 = vmatprep.subr.mxu0 0.0
  %2121 = vmatpush1.msra.mxu0 0.0
  %2122 = vmatprep.subr.mxu0 0.0
  %2123 = vmatpush1.msra.mxu0 0.0
  %2124 = vmatprep.subr.mxu0 0.0
  %2125 = vmatpush1.msra.mxu0 0.0
  %2126 = vmatprep.subr.mxu0 0.0
  %2127 = vmatpush1.msra.mxu0 %v2087
  %2128 = vmatprep.subr.mxu0 0.0
  %2129 = vmatpush1.msra.mxu0 %v2086
  %2130 = vmatprep.subr.mxu0 0.0
  %2131 = vmatpush2.msra.mxu0 0.0
  %2132 = vmatprep.subr.mxu0 0.0
  %2133 = vmatpush2.msra.mxu0 0.0
  %2134 = vmatprep.subr.mxu0 0.0
  %2135 = vmatpush2.msra.mxu0 0.0
  %2136 = vmatprep.subr.mxu0 0.0
  %2137 = vmatpush2.msra.mxu0 0.0
  %2138 = vmatprep.subr.mxu0 0.0
  %2139 = vmatpush2.msra.mxu0 0.0
  %2140 = vmatprep.subr.mxu0 0.0
  %2141 = vmatpush2.msra.mxu0 0.0
  %2142 = vmatprep.subr.mxu0 0.0
  %2143 = vmatpush2.msra.mxu0 0.0
  %2144 = vmatprep.subr.mxu0 0.0
  %2145 = vmatpush2.msra.mxu0 0.0
  %2146 = vmatprep.subr.mxu0 0.0
  %2147 = vmatpush2.msra.mxu0 0.0
  %2148 = vmatprep.subr.mxu0 0.0
  %2149 = vmatpush2.msra.mxu0 0.0
  %2150 = vmatprep.subr.mxu0 0.0
  %2151 = vmatpush2.msra.mxu0 0.0
  %2152 = vmatprep.subr.mxu0 0.0
  %2153 = vmatpush2.msra.mxu0 0.0
  %2154 = vmatprep.subr.mxu0 0.0
  %2155 = vmatpush2.msra.mxu0 0.0
  %2156 = vmatprep.subr.mxu0 0.0
  %2157 = vmatpush2.msra.mxu0 0.0
  %2158 = vmatprep.subr.mxu0 0.0
  %2159 = vmatpush2.msra.mxu0 0.0
  %2160 = vmatprep.subr.mxu0 0.0
  %2161 = vmatpush2.msra.mxu0 0.0
  %2162 = vmatprep.mubr.f32.mxu0 0.0
  %2163 = vmatmul.mubr.f32.gmra.mxu0 %v2096
  %v2164 = vpop.f32.mrf.mxu0
  %v2165 = vadd.f32 %v2093, %v2164
  %v2166 = vpop.f32.mrf.mxu0
  %2167 = vdwg.mxu0
  %v2168 = vmax.f32 %v2165, 0.0
  %v2169 = vld [vmem:[%s20] sm:$0xff]
  %v2170 = vld [vmem:[%s21] sm:$0x1]
  %v2172 = vlaneseq
  %v2173 = vshrl.u32 %v2172, 7
  %v2174 = vsub.s32 0, %v2173
  %v2175 = vrot.slane %v2170, %v2174
  %v2178 = vsel %vm77, %v2168, 0
  %2180 = vmatprep.subr.mxu0 0.0
  %2181 = vmatpush1.msra.mxu0 0.0
  %2182 = vmatprep.subr.mxu0 0.0
  %2183 = vmatpush1.msra.mxu0 0.0
  %2184 = vmatprep.subr.mxu0 0.0
  %2185 = vmatpush1.msra.mxu0 0.0
  %2186 = vmatprep.subr.mxu0 0.0
  %2187 = vmatpush1.msra.mxu0 0.0
  %2188 = vmatprep.subr.mxu0 0.0
  %2189 = vmatpush1.msra.mxu0 0.0
  %2190 = vmatprep.subr.mxu0 0.0
  %2191 = vmatpush1.msra.mxu0 0.0
  %2192 = vmatprep.subr.mxu0 0.0
  %2193 = vmatpush1.msra.mxu0 0.0
  %2194 = vmatprep.subr.mxu0 0.0
  %2195 = vmatpush1.msra.mxu0 0.0
  %2196 = vmatprep.subr.mxu0 0.0
  %2197 = vmatpush1.msra.mxu0 0.0
  %2198 = vmatprep.subr.mxu0 0.0
  %2199 = vmatpush1.msra.mxu0 0.0
  %2200 = vmatprep.subr.mxu0 0.0
  %2201 = vmatpush1.msra.mxu0 0.0
  %2202 = vmatprep.subr.mxu0 0.0
  %2203 = vmatpush1.msra.mxu0 0.0
  %2204 = vmatprep.subr.mxu0 0.0
  %2205 = vmatpush1.msra.mxu0 0.0
  %2206 = vmatprep.subr.mxu0 0.0
  %2207 = vmatpush1.msra.mxu0 0.0
  %2208 = vmatprep.subr.mxu0 0.0
  %2209 = vmatpush1.msra.mxu0 0.0
  %2210 = vmatprep.subr.mxu0 0.0
  %2211 = vmatpush1.msra.mxu0 %v2169
  %2212 = vmatprep.subr.mxu0 0.0
  %2213 = vmatpush2.msra.mxu0 0.0
  %2214 = vmatprep.subr.mxu0 0.0
  %2215 = vmatpush2.msra.mxu0 0.0
  %2216 = vmatprep.subr.mxu0 0.0
  %2217 = vmatpush2.msra.mxu0 0.0
  %2218 = vmatprep.subr.mxu0 0.0
  %2219 = vmatpush2.msra.mxu0 0.0
  %2220 = vmatprep.subr.mxu0 0.0
  %2221 = vmatpush2.msra.mxu0 0.0
  %2222 = vmatprep.subr.mxu0 0.0
  %2223 = vmatpush2.msra.mxu0 0.0
  %2224 = vmatprep.subr.mxu0 0.0
  %2225 = vmatpush2.msra.mxu0 0.0
  %2226 = vmatprep.subr.mxu0 0.0
  %2227 = vmatpush2.msra.mxu0 0.0
  %2228 = vmatprep.subr.mxu0 0.0
  %2229 = vmatpush2.msra.mxu0 0.0
  %2230 = vmatprep.subr.mxu0 0.0
  %2231 = vmatpush2.msra.mxu0 0.0
  %2232 = vmatprep.subr.mxu0 0.0
  %2233 = vmatpush2.msra.mxu0 0.0
  %2234 = vmatprep.subr.mxu0 0.0
  %2235 = vmatpush2.msra.mxu0 0.0
  %2236 = vmatprep.subr.mxu0 0.0
  %2237 = vmatpush2.msra.mxu0 0.0
  %2238 = vmatprep.subr.mxu0 0.0
  %2239 = vmatpush2.msra.mxu0 0.0
  %2240 = vmatprep.subr.mxu0 0.0
  %2241 = vmatpush2.msra.mxu0 0.0
  %2242 = vmatprep.subr.mxu0 0.0
  %2243 = vmatpush2.msra.mxu0 0.0
  %2244 = vmatprep.mubr.f32.mxu0 0.0
  %2245 = vmatmul.mubr.f32.gmra.mxu0 %v2178
  %v2246 = vpop.f32.mrf.mxu0
  %v2247 = vadd.f32 %v2175, %v2246
  %v2248 = vpop.f32.mrf.mxu0
  %2249 = vdwg.mxu0
  %vm2250 = vcmask 89088
  %2251 = vst.msk [vmem:[%s22] sm:$0xff] %vm2250, %v2247
  // Predicated region
  $region90: #{gnn_virtualnode_forward.1} parent=0 // pred_check
    _
  $region91: #{gnn_virtualnode_forward.1} parent=0 // pred_check_branch
    %2253 = sbr.rel (0) target = $region93
  $region92: #{gnn_virtualnode_forward.1} parent=0 // pred_region
    _
  $region93: #{gnn_virtualnode_forward.1} parent=0 // pred_fallthru
    _
  // Predicated region
  $region94: #{gnn_virtualnode_forward.1} parent=0 // pred_check
    _
  $region95: #{gnn_virtualnode_forward.1} parent=0 // pred_check_branch
    %2255 = sbr.rel (0) target = $region97
  $region96: #{gnn_virtualnode_forward.1} parent=0 // pred_region
    _
  $region97: #{gnn_virtualnode_forward.1} parent=0 // pred_fallthru
    _

</llo_original>
